<compile_context>
chip_gen: v7x
topology: tpu7x:2x2x1
jax: 0.10.0
libtpu: 0.0.40
codegen_flags: <defaults>
</compile_context>

<pallas_src>
import jax
import jax.numpy as jnp
from jax import lax
from jax.experimental import pallas as pl
from jax.experimental.pallas import tpu as pltpu


def _round_up(n, m):
    return (n + m - 1) // m * m


def lstm_kernel(x_ref, wih_ref, whh_ref, b_ref, wlin_ref, blin_ref, out_ref,
                xg_sc):
    T, I = x_ref.shape
    Hp = whh_ref.shape[0]          # padded hidden size (multiple of 128)

    # One-shot input projection with the bias folded in: (T, 4Hp).
    # This is the only O(T) work that sits off the serial recurrence chain.
    if I == 1:
        # K=1 matmul is a degenerate MXU push -> VPU broadcast outer product.
        xg_sc[...] = x_ref[...] * wih_ref[...] + b_ref[...]
    else:
        xg_sc[...] = (
            jnp.dot(x_ref[...], wih_ref[...], preferred_element_type=jnp.float32)
            + b_ref[...])

    def step(t, carry):
        h, c = carry                            # (1, Hp) values live in vregs
        gates = (xg_sc[pl.ds(t, 1), :]
                 + jnp.dot(h, whh_ref[...], preferred_element_type=jnp.float32))
        # Two full-width EUP passes over all four gates, then 128-lane-aligned
        # static slices (gate order i, f, g, o as in torch.nn.LSTM).
        sig = jax.nn.sigmoid(gates)
        tnh = jnp.tanh(gates)
        i_g = sig[:, 0 * Hp:1 * Hp]
        f_g = sig[:, 1 * Hp:2 * Hp]
        g_g = tnh[:, 2 * Hp:3 * Hp]
        o_g = sig[:, 3 * Hp:4 * Hp]
        c_new = f_g * c + i_g * g_g
        h_new = o_g * jnp.tanh(c_new)
        return h_new, c_new

    h0 = jnp.zeros((1, Hp), jnp.float32)        # zero initial hidden state
    c0 = jnp.zeros((1, Hp), jnp.float32)        # zero initial cell state
    # Short static trip count -> fully unroll so LLO schedules across steps
    # and the xg slices become static sublane slices.
    h_last, _ = lax.fori_loop(0, T, step, (h0, c0), unroll=True)

    # predictions[-1] == Linear(h_T); lane-dense (1, Op) store, sliced outside.
    # TODO(synk): on v7x, W_hh could be held resident in MXU staging registers
    # via pltpu.matmul_push_rhs / matmul_acc_lhs across the unrolled steps.
    out_ref[...] = (
        jnp.dot(h_last, wlin_ref[...], preferred_element_type=jnp.float32)
        + blin_ref[...])


@jax.jit
def lstm_forward(x, w_ih, w_hh, b_ih, b_hh, w_lin, b_lin):
    """x: (T,) or (T, I). Returns predictions[-1], shape (output_size,)."""
    T = x.shape[0]
    x2d = x.reshape(T, -1).astype(jnp.float32)             # (T, I)
    H = w_hh.shape[1]
    O = w_lin.shape[0]
    Hp = _round_up(H, 128)     # each gate becomes whole 128-lane vreg rows
    Op = _round_up(O, 128)     # lane-dense output store

    def pad_gate_rows(w):
        # (4H, X) -> (4Hp, X), padding each of the i/f/g/o blocks separately
        wg = w.reshape(4, H, -1).astype(jnp.float32)
        wg = jnp.pad(wg, ((0, 0), (0, Hp - H), (0, 0)))
        return wg.reshape(4 * Hp, -1)

    wih_t = pad_gate_rows(w_ih).T                                    # (I, 4Hp)
    whh_t = jnp.pad(pad_gate_rows(w_hh), ((0, 0), (0, Hp - H))).T    # (Hp, 4Hp)
    b = (b_ih + b_hh).astype(jnp.float32).reshape(4, H)
    b = jnp.pad(b, ((0, 0), (0, Hp - H))).reshape(1, 4 * Hp)         # (1, 4Hp)
    wlin_t = jnp.pad(w_lin.astype(jnp.float32),
                     ((0, Op - O), (0, Hp - H))).T                   # (Hp, Op)
    blin = jnp.pad(b_lin.astype(jnp.float32), (0, Op - O)).reshape(1, Op)

    out = pl.pallas_call(
        lstm_kernel,
        out_shape=jax.ShapeDtypeStruct((1, Op), jnp.float32),
        in_specs=[pl.BlockSpec(memory_space=pltpu.MemorySpace.VMEM)] * 6,
        out_specs=pl.BlockSpec(memory_space=pltpu.MemorySpace.VMEM),
        scratch_shapes=[pltpu.VMEM((T, 4 * Hp), jnp.float32)],  # x @ W_ih^T + b
    )(x2d, wih_t, whh_t, b, wlin_t, blin)
    return out[0, :O]                                          # shape (O,)


def lstm_reference(x, w_ih, w_hh, b_ih, b_hh, w_lin, b_lin):
    """Pure-JAX reference matching torch.nn.LSTM (+ Linear) forward."""
    T = x.shape[0]
    H = w_hh.shape[1]
    x2d = x.reshape(T, -1).astype(jnp.float32)
    xg = jnp.dot(x2d, w_ih.T, precision=lax.Precision.HIGHEST) + (b_ih + b_hh)

    def step(carry, gx):
        h, c = carry
        gates = gx + jnp.dot(w_hh, h, precision=lax.Precision.HIGHEST)
        i = jax.nn.sigmoid(gates[0:H])
        f = jax.nn.sigmoid(gates[H:2 * H])
        g = jnp.tanh(gates[2 * H:3 * H])
        o = jax.nn.sigmoid(gates[3 * H:4 * H])
        c = f * c + i * g
        h = o * jnp.tanh(c)
        return (h, c), None

    zeros = jnp.zeros((H,), jnp.float32)
    (h, _), _ = lax.scan(step, (zeros, zeros), xg)
    return jnp.dot(w_lin, h, precision=lax.Precision.HIGHEST) + b_lin


def init_params(key, input_size, hidden_size, output_size):
    """Deterministic init mimicking PyTorch's U(-1/sqrt(H), 1/sqrt(H))."""
    k = 1.0 / jnp.sqrt(jnp.float32(hidden_size))
    keys = jax.random.split(key, 6)
    u = lambda kk, shape: jax.random.uniform(kk, shape, jnp.float32, -k, k)
    w_ih = u(keys[0], (4 * hidden_size, input_size))
    w_hh = u(keys[1], (4 * hidden_size, hidden_size))
    b_ih = u(keys[2], (4 * hidden_size,))
    b_hh = u(keys[3], (4 * hidden_size,))
    w_lin = u(keys[4], (output_size, hidden_size))
    b_lin = u(keys[5], (output_size,))
    return w_ih, w_hh, b_ih, b_hh, w_lin, b_lin


if __name__ == "__main__":
    INPUT_SIZE = 1
    HIDDEN_SIZE = 100   # module default; padded to 128 lanes inside the wrapper
    OUTPUT_SIZE = 1
    SEQ_LEN = 8

    root = jax.random.PRNGKey(0)
    k_x, k_p = jax.random.split(root)
    input_seq = jax.random.normal(k_x, (SEQ_LEN,), dtype=jnp.float32)
    params = init_params(k_p, INPUT_SIZE, HIDDEN_SIZE, OUTPUT_SIZE)

    pred_last = lstm_forward(input_seq, *params)
    jax.block_until_ready(pred_last)

    ref = lstm_reference(input_seq, *params)
    assert pred_last.shape == (OUTPUT_SIZE,)
    assert jnp.isfinite(pred_last).all()
    assert jnp.allclose(pred_last, ref, rtol=5e-3, atol=5e-3), (pred_last, ref)
    print("KERNEL_OK")
</pallas_src>

<mosaic_0001>
module attributes {stable_mosaic.version = 11 : i64} {
  func.func @lstm_kernel(%arg0: memref<8x1xf32, #tpu.memory_space<vmem>>, %arg1: memref<1x512xf32, #tpu.memory_space<vmem>>, %arg2: memref<128x512xf32, #tpu.memory_space<vmem>>, %arg3: memref<1x512xf32, #tpu.memory_space<vmem>>, %arg4: memref<128x128xf32, #tpu.memory_space<vmem>>, %arg5: memref<1x128xf32, #tpu.memory_space<vmem>>, %arg6: memref<1x128xf32, #tpu.memory_space<vmem>>, %arg7: memref<8x512xf32, #tpu.memory_space<vmem>>) attributes {dimension_semantics = [], scalar_prefetch = 0 : i64, scratch_operands = 1 : i64, tpu.core_type = #tpu.core_type<tc>} {
    %c0 = arith.constant 0 : index
    %c0_0 = arith.constant 0 : index
    %0 = vector.load %arg0[%c0, %c0_0] : memref<8x1xf32, #tpu.memory_space<vmem>>, vector<8x1xf32>
    %c0_1 = arith.constant 0 : index
    %c0_2 = arith.constant 0 : index
    %1 = vector.load %arg1[%c0_1, %c0_2] : memref<1x512xf32, #tpu.memory_space<vmem>>, vector<1x512xf32>
    %2 = vector.broadcast %0 : vector<8x1xf32> to vector<8x512xf32>
    %3 = vector.broadcast %1 : vector<1x512xf32> to vector<8x512xf32>
    %4 = arith.mulf %2, %3 : vector<8x512xf32>
    %c0_3 = arith.constant 0 : index
    %c0_4 = arith.constant 0 : index
    %5 = vector.load %arg3[%c0_3, %c0_4] : memref<1x512xf32, #tpu.memory_space<vmem>>, vector<1x512xf32>
    %6 = vector.broadcast %5 : vector<1x512xf32> to vector<8x512xf32>
    %7 = arith.addf %4, %6 : vector<8x512xf32>
    %c0_5 = arith.constant 0 : index
    %c0_6 = arith.constant 0 : index
    %8 = vector.load %arg7[%c0_5, %c0_6] : memref<8x512xf32, #tpu.memory_space<vmem>>, vector<8x512xf32>
    tpu.vector_store %arg7[%c0_5, %c0_6], %7 {strides = array<i32>} : memref<8x512xf32, #tpu.memory_space<vmem>>, vector<8x512xf32>,
    %cst = arith.constant 0.000000e+00 : f32
    %9 = vector.broadcast %cst : f32 to vector<1x128xf32>
    %cst_7 = arith.constant 0.000000e+00 : f32
    %10 = vector.broadcast %cst_7 : f32 to vector<1x128xf32>
    %c0_i32 = arith.constant 0 : i32
    %11 = arith.index_cast %c0_i32 : i32 to index
    %c0_8 = arith.constant 0 : index
    %12 = vector.load %arg7[%11, %c0_8] : memref<8x512xf32, #tpu.memory_space<vmem>>, vector<1x512xf32>
    %c0_9 = arith.constant 0 : index
    %c0_10 = arith.constant 0 : index
    %13 = vector.load %arg2[%c0_9, %c0_10] : memref<128x512xf32, #tpu.memory_space<vmem>>, vector<128x512xf32>
    %cst_11 = arith.constant dense<0.000000e+00> : vector<1x512xf32>
    %14 = tpu.matmul %9, %13, %cst_11 {dimension_numbers = #tpu.dot_dimension_numbers<[1], [0], [0], [1], [0, 0, 1, 1], [], []>} : vector<1x128xf32>, vector<128x512xf32>, vector<1x512xf32> -> vector<1x512xf32>
    %15 = arith.addf %12, %14 : vector<1x512xf32>
    %16 = arith.negf %15 : vector<1x512xf32>
    %17 = math.exp %16 : vector<1x512xf32>
    %cst_12 = arith.constant 1.000000e+00 : f32
    %18 = vector.broadcast %cst_12 : f32 to vector<1x512xf32>
    %19 = arith.addf %18, %17 : vector<1x512xf32>
    %20 = arith.divf %18, %19 : vector<1x512xf32>
    %21 = math.tanh %15 : vector<1x512xf32>
    %22 = vector.extract_strided_slice %20 {offsets = [0, 0], sizes = [1, 128], strides = [1, 1]} : vector<1x512xf32> to vector<1x128xf32>
    %23 = vector.extract_strided_slice %20 {offsets = [0, 128], sizes = [1, 128], strides = [1, 1]} : vector<1x512xf32> to vector<1x128xf32>
    %24 = vector.extract_strided_slice %21 {offsets = [0, 256], sizes = [1, 128], strides = [1, 1]} : vector<1x512xf32> to vector<1x128xf32>
    %25 = vector.extract_strided_slice %20 {offsets = [0, 384], sizes = [1, 128], strides = [1, 1]} : vector<1x512xf32> to vector<1x128xf32>
    %26 = arith.mulf %23, %10 : vector<1x128xf32>
    %27 = arith.mulf %22, %24 : vector<1x128xf32>
    %28 = arith.addf %26, %27 : vector<1x128xf32>
    %29 = math.tanh %28 : vector<1x128xf32>
    %30 = arith.mulf %25, %29 : vector<1x128xf32>
    %c1_i32 = arith.constant 1 : i32
    %31 = arith.index_cast %c1_i32 : i32 to index
    %c0_13 = arith.constant 0 : index
    %32 = vector.load %arg7[%31, %c0_13] : memref<8x512xf32, #tpu.memory_space<vmem>>, vector<1x512xf32>
    %c0_14 = arith.constant 0 : index
    %c0_15 = arith.constant 0 : index
    %33 = vector.load %arg2[%c0_14, %c0_15] : memref<128x512xf32, #tpu.memory_space<vmem>>, vector<128x512xf32>
    %cst_16 = arith.constant dense<0.000000e+00> : vector<1x512xf32>
    %34 = tpu.matmul %30, %33, %cst_16 {dimension_numbers = #tpu.dot_dimension_numbers<[1], [0], [0], [1], [0, 0, 1, 1], [], []>} : vector<1x128xf32>, vector<128x512xf32>, vector<1x512xf32> -> vector<1x512xf32>
    %35 = arith.addf %32, %34 : vector<1x512xf32>
    %36 = arith.negf %35 : vector<1x512xf32>
    %37 = math.exp %36 : vector<1x512xf32>
    %cst_17 = arith.constant 1.000000e+00 : f32
    %38 = vector.broadcast %cst_17 : f32 to vector<1x512xf32>
    %39 = arith.addf %38, %37 : vector<1x512xf32>
    %40 = arith.divf %38, %39 : vector<1x512xf32>
    %41 = math.tanh %35 : vector<1x512xf32>
    %42 = vector.extract_strided_slice %40 {offsets = [0, 0], sizes = [1, 128], strides = [1, 1]} : vector<1x512xf32> to vector<1x128xf32>
    %43 = vector.extract_strided_slice %40 {offsets = [0, 128], sizes = [1, 128], strides = [1, 1]} : vector<1x512xf32> to vector<1x128xf32>
    %44 = vector.extract_strided_slice %41 {offsets = [0, 256], sizes = [1, 128], strides = [1, 1]} : vector<1x512xf32> to vector<1x128xf32>
    %45 = vector.extract_strided_slice %40 {offsets = [0, 384], sizes = [1, 128], strides = [1, 1]} : vector<1x512xf32> to vector<1x128xf32>
    %46 = arith.mulf %43, %28 : vector<1x128xf32>
    %47 = arith.mulf %42, %44 : vector<1x128xf32>
    %48 = arith.addf %46, %47 : vector<1x128xf32>
    %49 = math.tanh %48 : vector<1x128xf32>
    %50 = arith.mulf %45, %49 : vector<1x128xf32>
    %c2_i32 = arith.constant 2 : i32
    %51 = arith.index_cast %c2_i32 : i32 to index
    %c0_18 = arith.constant 0 : index
    %52 = vector.load %arg7[%51, %c0_18] : memref<8x512xf32, #tpu.memory_space<vmem>>, vector<1x512xf32>
    %c0_19 = arith.constant 0 : index
    %c0_20 = arith.constant 0 : index
    %53 = vector.load %arg2[%c0_19, %c0_20] : memref<128x512xf32, #tpu.memory_space<vmem>>, vector<128x512xf32>
    %cst_21 = arith.constant dense<0.000000e+00> : vector<1x512xf32>
    %54 = tpu.matmul %50, %53, %cst_21 {dimension_numbers = #tpu.dot_dimension_numbers<[1], [0], [0], [1], [0, 0, 1, 1], [], []>} : vector<1x128xf32>, vector<128x512xf32>, vector<1x512xf32> -> vector<1x512xf32>
    %55 = arith.addf %52, %54 : vector<1x512xf32>
    %56 = arith.negf %55 : vector<1x512xf32>
    %57 = math.exp %56 : vector<1x512xf32>
    %cst_22 = arith.constant 1.000000e+00 : f32
    %58 = vector.broadcast %cst_22 : f32 to vector<1x512xf32>
    %59 = arith.addf %58, %57 : vector<1x512xf32>
    %60 = arith.divf %58, %59 : vector<1x512xf32>
    %61 = math.tanh %55 : vector<1x512xf32>
    %62 = vector.extract_strided_slice %60 {offsets = [0, 0], sizes = [1, 128], strides = [1, 1]} : vector<1x512xf32> to vector<1x128xf32>
    %63 = vector.extract_strided_slice %60 {offsets = [0, 128], sizes = [1, 128], strides = [1, 1]} : vector<1x512xf32> to vector<1x128xf32>
    %64 = vector.extract_strided_slice %61 {offsets = [0, 256], sizes = [1, 128], strides = [1, 1]} : vector<1x512xf32> to vector<1x128xf32>
    %65 = vector.extract_strided_slice %60 {offsets = [0, 384], sizes = [1, 128], strides = [1, 1]} : vector<1x512xf32> to vector<1x128xf32>
    %66 = arith.mulf %63, %48 : vector<1x128xf32>
    %67 = arith.mulf %62, %64 : vector<1x128xf32>
    %68 = arith.addf %66, %67 : vector<1x128xf32>
    %69 = math.tanh %68 : vector<1x128xf32>
    %70 = arith.mulf %65, %69 : vector<1x128xf32>
    %c3_i32 = arith.constant 3 : i32
    %71 = arith.index_cast %c3_i32 : i32 to index
    %c0_23 = arith.constant 0 : index
    %72 = vector.load %arg7[%71, %c0_23] : memref<8x512xf32, #tpu.memory_space<vmem>>, vector<1x512xf32>
    %c0_24 = arith.constant 0 : index
    %c0_25 = arith.constant 0 : index
    %73 = vector.load %arg2[%c0_24, %c0_25] : memref<128x512xf32, #tpu.memory_space<vmem>>, vector<128x512xf32>
    %cst_26 = arith.constant dense<0.000000e+00> : vector<1x512xf32>
    %74 = tpu.matmul %70, %73, %cst_26 {dimension_numbers = #tpu.dot_dimension_numbers<[1], [0], [0], [1], [0, 0, 1, 1], [], []>} : vector<1x128xf32>, vector<128x512xf32>, vector<1x512xf32> -> vector<1x512xf32>
    %75 = arith.addf %72, %74 : vector<1x512xf32>
    %76 = arith.negf %75 : vector<1x512xf32>
    %77 = math.exp %76 : vector<1x512xf32>
    %cst_27 = arith.constant 1.000000e+00 : f32
    %78 = vector.broadcast %cst_27 : f32 to vector<1x512xf32>
    %79 = arith.addf %78, %77 : vector<1x512xf32>
    %80 = arith.divf %78, %79 : vector<1x512xf32>
    %81 = math.tanh %75 : vector<1x512xf32>
    %82 = vector.extract_strided_slice %80 {offsets = [0, 0], sizes = [1, 128], strides = [1, 1]} : vector<1x512xf32> to vector<1x128xf32>
    %83 = vector.extract_strided_slice %80 {offsets = [0, 128], sizes = [1, 128], strides = [1, 1]} : vector<1x512xf32> to vector<1x128xf32>
    %84 = vector.extract_strided_slice %81 {offsets = [0, 256], sizes = [1, 128], strides = [1, 1]} : vector<1x512xf32> to vector<1x128xf32>
    %85 = vector.extract_strided_slice %80 {offsets = [0, 384], sizes = [1, 128], strides = [1, 1]} : vector<1x512xf32> to vector<1x128xf32>
    %86 = arith.mulf %83, %68 : vector<1x128xf32>
    %87 = arith.mulf %82, %84 : vector<1x128xf32>
    %88 = arith.addf %86, %87 : vector<1x128xf32>
    %89 = math.tanh %88 : vector<1x128xf32>
    %90 = arith.mulf %85, %89 : vector<1x128xf32>
    %c4_i32 = arith.constant 4 : i32
    %91 = arith.index_cast %c4_i32 : i32 to index
    %c0_28 = arith.constant 0 : index
    %92 = vector.load %arg7[%91, %c0_28] : memref<8x512xf32, #tpu.memory_space<vmem>>, vector<1x512xf32>
    %c0_29 = arith.constant 0 : index
    %c0_30 = arith.constant 0 : index
    %93 = vector.load %arg2[%c0_29, %c0_30] : memref<128x512xf32, #tpu.memory_space<vmem>>, vector<128x512xf32>
    %cst_31 = arith.constant dense<0.000000e+00> : vector<1x512xf32>
    %94 = tpu.matmul %90, %93, %cst_31 {dimension_numbers = #tpu.dot_dimension_numbers<[1], [0], [0], [1], [0, 0, 1, 1], [], []>} : vector<1x128xf32>, vector<128x512xf32>, vector<1x512xf32> -> vector<1x512xf32>
    %95 = arith.addf %92, %94 : vector<1x512xf32>
    %96 = arith.negf %95 : vector<1x512xf32>
    %97 = math.exp %96 : vector<1x512xf32>
    %cst_32 = arith.constant 1.000000e+00 : f32
    %98 = vector.broadcast %cst_32 : f32 to vector<1x512xf32>
    %99 = arith.addf %98, %97 : vector<1x512xf32>
    %100 = arith.divf %98, %99 : vector<1x512xf32>
    %101 = math.tanh %95 : vector<1x512xf32>
    %102 = vector.extract_strided_slice %100 {offsets = [0, 0], sizes = [1, 128], strides = [1, 1]} : vector<1x512xf32> to vector<1x128xf32>
    %103 = vector.extract_strided_slice %100 {offsets = [0, 128], sizes = [1, 128], strides = [1, 1]} : vector<1x512xf32> to vector<1x128xf32>
    %104 = vector.extract_strided_slice %101 {offsets = [0, 256], sizes = [1, 128], strides = [1, 1]} : vector<1x512xf32> to vector<1x128xf32>
    %105 = vector.extract_strided_slice %100 {offsets = [0, 384], sizes = [1, 128], strides = [1, 1]} : vector<1x512xf32> to vector<1x128xf32>
    %106 = arith.mulf %103, %88 : vector<1x128xf32>
    %107 = arith.mulf %102, %104 : vector<1x128xf32>
    %108 = arith.addf %106, %107 : vector<1x128xf32>
    %109 = math.tanh %108 : vector<1x128xf32>
    %110 = arith.mulf %105, %109 : vector<1x128xf32>
    %c5_i32 = arith.constant 5 : i32
    %111 = arith.index_cast %c5_i32 : i32 to index
    %c0_33 = arith.constant 0 : index
    %112 = vector.load %arg7[%111, %c0_33] : memref<8x512xf32, #tpu.memory_space<vmem>>, vector<1x512xf32>
    %c0_34 = arith.constant 0 : index
    %c0_35 = arith.constant 0 : index
    %113 = vector.load %arg2[%c0_34, %c0_35] : memref<128x512xf32, #tpu.memory_space<vmem>>, vector<128x512xf32>
    %cst_36 = arith.constant dense<0.000000e+00> : vector<1x512xf32>
    %114 = tpu.matmul %110, %113, %cst_36 {dimension_numbers = #tpu.dot_dimension_numbers<[1], [0], [0], [1], [0, 0, 1, 1], [], []>} : vector<1x128xf32>, vector<128x512xf32>, vector<1x512xf32> -> vector<1x512xf32>
    %115 = arith.addf %112, %114 : vector<1x512xf32>
    %116 = arith.negf %115 : vector<1x512xf32>
    %117 = math.exp %116 : vector<1x512xf32>
    %cst_37 = arith.constant 1.000000e+00 : f32
    %118 = vector.broadcast %cst_37 : f32 to vector<1x512xf32>
    %119 = arith.addf %118, %117 : vector<1x512xf32>
    %120 = arith.divf %118, %119 : vector<1x512xf32>
    %121 = math.tanh %115 : vector<1x512xf32>
    %122 = vector.extract_strided_slice %120 {offsets = [0, 0], sizes = [1, 128], strides = [1, 1]} : vector<1x512xf32> to vector<1x128xf32>
    %123 = vector.extract_strided_slice %120 {offsets = [0, 128], sizes = [1, 128], strides = [1, 1]} : vector<1x512xf32> to vector<1x128xf32>
    %124 = vector.extract_strided_slice %121 {offsets = [0, 256], sizes = [1, 128], strides = [1, 1]} : vector<1x512xf32> to vector<1x128xf32>
    %125 = vector.extract_strided_slice %120 {offsets = [0, 384], sizes = [1, 128], strides = [1, 1]} : vector<1x512xf32> to vector<1x128xf32>
    %126 = arith.mulf %123, %108 : vector<1x128xf32>
    %127 = arith.mulf %122, %124 : vector<1x128xf32>
    %128 = arith.addf %126, %127 : vector<1x128xf32>
    %129 = math.tanh %128 : vector<1x128xf32>
    %130 = arith.mulf %125, %129 : vector<1x128xf32>
    %c6_i32 = arith.constant 6 : i32
    %131 = arith.index_cast %c6_i32 : i32 to index
    %c0_38 = arith.constant 0 : index
    %132 = vector.load %arg7[%131, %c0_38] : memref<8x512xf32, #tpu.memory_space<vmem>>, vector<1x512xf32>
    %c0_39 = arith.constant 0 : index
    %c0_40 = arith.constant 0 : index
    %133 = vector.load %arg2[%c0_39, %c0_40] : memref<128x512xf32, #tpu.memory_space<vmem>>, vector<128x512xf32>
    %cst_41 = arith.constant dense<0.000000e+00> : vector<1x512xf32>
    %134 = tpu.matmul %130, %133, %cst_41 {dimension_numbers = #tpu.dot_dimension_numbers<[1], [0], [0], [1], [0, 0, 1, 1], [], []>} : vector<1x128xf32>, vector<128x512xf32>, vector<1x512xf32> -> vector<1x512xf32>
    %135 = arith.addf %132, %134 : vector<1x512xf32>
    %136 = arith.negf %135 : vector<1x512xf32>
    %137 = math.exp %136 : vector<1x512xf32>
    %cst_42 = arith.constant 1.000000e+00 : f32
    %138 = vector.broadcast %cst_42 : f32 to vector<1x512xf32>
    %139 = arith.addf %138, %137 : vector<1x512xf32>
    %140 = arith.divf %138, %139 : vector<1x512xf32>
    %141 = math.tanh %135 : vector<1x512xf32>
    %142 = vector.extract_strided_slice %140 {offsets = [0, 0], sizes = [1, 128], strides = [1, 1]} : vector<1x512xf32> to vector<1x128xf32>
    %143 = vector.extract_strided_slice %140 {offsets = [0, 128], sizes = [1, 128], strides = [1, 1]} : vector<1x512xf32> to vector<1x128xf32>
    %144 = vector.extract_strided_slice %141 {offsets = [0, 256], sizes = [1, 128], strides = [1, 1]} : vector<1x512xf32> to vector<1x128xf32>
    %145 = vector.extract_strided_slice %140 {offsets = [0, 384], sizes = [1, 128], strides = [1, 1]} : vector<1x512xf32> to vector<1x128xf32>
    %146 = arith.mulf %143, %128 : vector<1x128xf32>
    %147 = arith.mulf %142, %144 : vector<1x128xf32>
    %148 = arith.addf %146, %147 : vector<1x128xf32>
    %149 = math.tanh %148 : vector<1x128xf32>
    %150 = arith.mulf %145, %149 : vector<1x128xf32>
    %c7_i32 = arith.constant 7 : i32
    %151 = arith.index_cast %c7_i32 : i32 to index
    %c0_43 = arith.constant 0 : index
    %152 = vector.load %arg7[%151, %c0_43] : memref<8x512xf32, #tpu.memory_space<vmem>>, vector<1x512xf32>
    %c0_44 = arith.constant 0 : index
    %c0_45 = arith.constant 0 : index
    %153 = vector.load %arg2[%c0_44, %c0_45] : memref<128x512xf32, #tpu.memory_space<vmem>>, vector<128x512xf32>
    %cst_46 = arith.constant dense<0.000000e+00> : vector<1x512xf32>
    %154 = tpu.matmul %150, %153, %cst_46 {dimension_numbers = #tpu.dot_dimension_numbers<[1], [0], [0], [1], [0, 0, 1, 1], [], []>} : vector<1x128xf32>, vector<128x512xf32>, vector<1x512xf32> -> vector<1x512xf32>
    %155 = arith.addf %152, %154 : vector<1x512xf32>
    %156 = arith.negf %155 : vector<1x512xf32>
    %157 = math.exp %156 : vector<1x512xf32>
    %cst_47 = arith.constant 1.000000e+00 : f32
    %158 = vector.broadcast %cst_47 : f32 to vector<1x512xf32>
    %159 = arith.addf %158, %157 : vector<1x512xf32>
    %160 = arith.divf %158, %159 : vector<1x512xf32>
    %161 = math.tanh %155 : vector<1x512xf32>
    %162 = vector.extract_strided_slice %160 {offsets = [0, 0], sizes = [1, 128], strides = [1, 1]} : vector<1x512xf32> to vector<1x128xf32>
    %163 = vector.extract_strided_slice %160 {offsets = [0, 128], sizes = [1, 128], strides = [1, 1]} : vector<1x512xf32> to vector<1x128xf32>
    %164 = vector.extract_strided_slice %161 {offsets = [0, 256], sizes = [1, 128], strides = [1, 1]} : vector<1x512xf32> to vector<1x128xf32>
    %165 = vector.extract_strided_slice %160 {offsets = [0, 384], sizes = [1, 128], strides = [1, 1]} : vector<1x512xf32> to vector<1x128xf32>
    %166 = arith.mulf %163, %148 : vector<1x128xf32>
    %167 = arith.mulf %162, %164 : vector<1x128xf32>
    %168 = arith.addf %166, %167 : vector<1x128xf32>
    %169 = math.tanh %168 : vector<1x128xf32>
    %170 = arith.mulf %165, %169 : vector<1x128xf32>
    %c8_i32 = arith.constant 8 : i32
    %c0_48 = arith.constant 0 : index
    %c0_49 = arith.constant 0 : index
    %171 = vector.load %arg4[%c0_48, %c0_49] : memref<128x128xf32, #tpu.memory_space<vmem>>, vector<128x128xf32>
    %cst_50 = arith.constant dense<0.000000e+00> : vector<1x128xf32>
    %172 = tpu.matmul %170, %171, %cst_50 {dimension_numbers = #tpu.dot_dimension_numbers<[1], [0], [0], [1], [0, 0, 1, 1], [], []>} : vector<1x128xf32>, vector<128x128xf32>, vector<1x128xf32> -> vector<1x128xf32>
    %c0_51 = arith.constant 0 : index
    %c0_52 = arith.constant 0 : index
    %173 = vector.load %arg5[%c0_51, %c0_52] : memref<1x128xf32, #tpu.memory_space<vmem>>, vector<1x128xf32>
    %174 = arith.addf %172, %173 : vector<1x128xf32>
    %c0_53 = arith.constant 0 : index
    %c0_54 = arith.constant 0 : index
    %175 = vector.load %arg6[%c0_53, %c0_54] : memref<1x128xf32, #tpu.memory_space<vmem>>, vector<1x128xf32>
    tpu.vector_store %arg6[%c0_53, %c0_54], %174 {strides = array<i32>} : memref<1x128xf32, #tpu.memory_space<vmem>>, vector<1x128xf32>,
    return
  }
}

</mosaic_0001>

<llo_original>
// kernel: lstm_forward.1
$region0: #{lstm_forward.1}
  #allocation0 [shape = 'u32[]', space=smem, size = 0x4, offset = 0x4, fixed_abs, tag = 'smem constant byte address 0x4 - core index']
  #allocation1 [shape = 'u32[144,128]{1,0:T(1,128)}', space=vmem, size = 0x12000, scoped, tag = 'internal scratch']
  #allocation2 [shape = 'f32[8,512]{1,0:T(8,128)}', space=vmem, size = 0x4000, scoped, tag = 'scratch operand']
  %s0 = inlined_call_operand.vmem [shape: f32[8,1], index: 0, kind: input, shape index: {}]
  %s1 = inlined_call_operand.vmem [shape: f32[1,512], index: 1, kind: input, shape index: {}]
  %s2 = inlined_call_operand.vmem [shape: f32[128,512], index: 2, kind: input, shape index: {}]
  %s3 = inlined_call_operand.vmem [shape: f32[1,512], index: 3, kind: input, shape index: {}]
  %s4 = inlined_call_operand.vmem [shape: f32[128,128], index: 4, kind: input, shape index: {}]
  %s5 = inlined_call_operand.vmem [shape: f32[1,128], index: 5, kind: input, shape index: {}]
  %s6 = inlined_call_operand.hbm [shape: f32[1,128], index: 6, kind: output, shape index: {}]
  %s7 = sld [smem:[#allocation0]]
  $region34: #{lstm_forward.1} parent=0
    _
  %s9 = ssub.s32 1, %s7
  %s10 = scalar_select 0, %s9, %s7
  $region1: #{lstm_forward.1} parent=0
    #allocation3 [shape = 'u8[512]{0}', space=vmem, size = 0x400, scoped, tag = 'output window, operand 0, single buffered']
    #allocation4 [shape = 's32[1]{0}', space=sflag, size = 0x4, scoped, tag = 'scoped memory for lstm_forward.1']
    %11 = vsyncpa [#allocation4], 0
    // Predicated region
    $region2: #{lstm_forward.1} parent=1 // pred_check
      _
    $region3: #{lstm_forward.1} parent=1 // pred_check_branch
      %13 = sbr.rel (0) target = $region5
    $region4: #{lstm_forward.1} parent=1 // pred_region
      _
    $region5: #{lstm_forward.1} parent=1 // pred_fallthru
      _
    // Predicated region
    $region6: #{lstm_forward.1} parent=1 // pred_check
      _
    $region7: #{lstm_forward.1} parent=1 // pred_check_branch
      %15 = sbr.rel (0) target = $region9
    $region8: #{lstm_forward.1} parent=1 // pred_region
      _
    $region9: #{lstm_forward.1} parent=1 // pred_fallthru
      _
    // Predicated region
    $region10: #{lstm_forward.1} parent=1 // pred_check
      _
    $region11: #{lstm_forward.1} parent=1 // pred_check_branch
      %17 = sbr.rel (0) target = $region13
    $region12: #{lstm_forward.1} parent=1 // pred_region
      _
    $region13: #{lstm_forward.1} parent=1 // pred_fallthru
      _
    // Predicated region
    $region14: #{lstm_forward.1} parent=1 // pred_check
      _
    $region15: #{lstm_forward.1} parent=1 // pred_check_branch
      %19 = sbr.rel (0) target = $region17
    $region16: #{lstm_forward.1} parent=1 // pred_region
      _
    $region17: #{lstm_forward.1} parent=1 // pred_fallthru
      _
    // Predicated region
    $region18: #{lstm_forward.1} parent=1 // pred_check
      _
    $region19: #{lstm_forward.1} parent=1 // pred_check_branch
      %21 = sbr.rel (0) target = $region21
    $region20: #{lstm_forward.1} parent=1 // pred_region
      _
    $region21: #{lstm_forward.1} parent=1 // pred_fallthru
      _
    // Predicated region
    $region22: #{lstm_forward.1} parent=1 // pred_check
      _
    $region23: #{lstm_forward.1} parent=1 // pred_check_branch
      %23 = sbr.rel (0) target = $region25
    $region24: #{lstm_forward.1} parent=1 // pred_region
      _
    $region25: #{lstm_forward.1} parent=1 // pred_fallthru
      _
    %v24 = vld [vmem:[%s0] sm:$0xff]
    %v25 = vld [vmem:[%s1] sm:$0xf]
    %27 = vset.pattern.permute.xlu0 0
    %28 = vperm.xlu0 %27, %v24
    %v29 = vpop.permute.xlu0 %28
    %v32 = vlaneseq
    %v33 = vshrl.u32 %v32, 7
    %v34 = vsub.s32 0, %v33
    %v35 = vrot.slane %v25, %v34
    %v36 = vlaneseq
    %v37 = vshrl.u32 %v36, 7
    %v38 = vsub.s32 1, %v37
    %v39 = vrot.slane %v25, %v38
    %v40 = vlaneseq
    %v41 = vshrl.u32 %v40, 7
    %v42 = vsub.s32 2, %v41
    %v43 = vrot.slane %v25, %v42
    %v44 = vlaneseq
    %v45 = vshrl.u32 %v44, 7
    %v46 = vsub.s32 3, %v45
    %v47 = vrot.slane %v25, %v46
    %v52 = vmul.f32 %v29, %v35
    %v53 = vmul.f32 %v29, %v39
    %v54 = vmul.f32 %v29, %v43
    %v55 = vmul.f32 %v29, %v47
    %v56 = vld [vmem:[%s3] sm:$0xf]
    %v58 = vlaneseq
    %v59 = vshrl.u32 %v58, 7
    %v60 = vsub.s32 0, %v59
    %v61 = vrot.slane %v56, %v60
    %v62 = vlaneseq
    %v63 = vshrl.u32 %v62, 7
    %v64 = vsub.s32 1, %v63
    %v65 = vrot.slane %v56, %v64
    %v66 = vlaneseq
    %v67 = vshrl.u32 %v66, 7
    %v68 = vsub.s32 2, %v67
    %v69 = vrot.slane %v56, %v68
    %v70 = vlaneseq
    %v71 = vshrl.u32 %v70, 7
    %v72 = vsub.s32 3, %v71
    %v73 = vrot.slane %v56, %v72
    %v78 = vadd.f32 %v52, %v61
    %v79 = vadd.f32 %v53, %v65
    %v80 = vadd.f32 %v54, %v69
    %v81 = vadd.f32 %v55, %v73
    %82 = vst [vmem:[#allocation2] sm:$0xff] %v78
    %83 = vst [vmem:[#allocation2 + $0x8] sm:$0xff] %v79
    %84 = vst [vmem:[#allocation2 + $0x10] sm:$0xff] %v80
    %85 = vst [vmem:[#allocation2 + $0x18] sm:$0xff] %v81
    %v86 = vld [vmem:[#allocation2] ss:$8 sm:$0xf]
    %v87 = vld [vmem:[%s2] sm:$0xff]
    %v88 = vld [vmem:[%s2 + $0x8] sm:$0xff]
    %v89 = vld [vmem:[%s2 + $0x10] sm:$0xff]
    %v90 = vld [vmem:[%s2 + $0x18] sm:$0xff]
    %v91 = vld [vmem:[%s2 + $0x20] sm:$0xff]
    %v92 = vld [vmem:[%s2 + $0x28] sm:$0xff]
    %v93 = vld [vmem:[%s2 + $0x30] sm:$0xff]
    %v94 = vld [vmem:[%s2 + $0x38] sm:$0xff]
    %v95 = vld [vmem:[%s2 + $0x40] sm:$0xff]
    %v96 = vld [vmem:[%s2 + $0x48] sm:$0xff]
    %v97 = vld [vmem:[%s2 + $0x50] sm:$0xff]
    %v98 = vld [vmem:[%s2 + $0x58] sm:$0xff]
    %v99 = vld [vmem:[%s2 + $0x60] sm:$0xff]
    %v100 = vld [vmem:[%s2 + $0x68] sm:$0xff]
    %v101 = vld [vmem:[%s2 + $0x70] sm:$0xff]
    %v102 = vld [vmem:[%s2 + $0x78] sm:$0xff]
    %v103 = vld [vmem:[%s2 + $0x80] sm:$0xff]
    %v104 = vld [vmem:[%s2 + $0x88] sm:$0xff]
    %v105 = vld [vmem:[%s2 + $0x90] sm:$0xff]
    %v106 = vld [vmem:[%s2 + $0x98] sm:$0xff]
    %v107 = vld [vmem:[%s2 + $0xa0] sm:$0xff]
    %v108 = vld [vmem:[%s2 + $0xa8] sm:$0xff]
    %v109 = vld [vmem:[%s2 + $0xb0] sm:$0xff]
    %v110 = vld [vmem:[%s2 + $0xb8] sm:$0xff]
    %v111 = vld [vmem:[%s2 + $0xc0] sm:$0xff]
    %v112 = vld [vmem:[%s2 + $0xc8] sm:$0xff]
    %v113 = vld [vmem:[%s2 + $0xd0] sm:$0xff]
    %v114 = vld [vmem:[%s2 + $0xd8] sm:$0xff]
    %v115 = vld [vmem:[%s2 + $0xe0] sm:$0xff]
    %v116 = vld [vmem:[%s2 + $0xe8] sm:$0xff]
    %v117 = vld [vmem:[%s2 + $0xf0] sm:$0xff]
    %v118 = vld [vmem:[%s2 + $0xf8] sm:$0xff]
    %v119 = vld [vmem:[%s2 + $0x100] sm:$0xff]
    %v120 = vld [vmem:[%s2 + $0x108] sm:$0xff]
    %v121 = vld [vmem:[%s2 + $0x110] sm:$0xff]
    %v122 = vld [vmem:[%s2 + $0x118] sm:$0xff]
    %v123 = vld [vmem:[%s2 + $0x120] sm:$0xff]
    %v124 = vld [vmem:[%s2 + $0x128] sm:$0xff]
    %v125 = vld [vmem:[%s2 + $0x130] sm:$0xff]
    %v126 = vld [vmem:[%s2 + $0x138] sm:$0xff]
    %v127 = vld [vmem:[%s2 + $0x140] sm:$0xff]
    %v128 = vld [vmem:[%s2 + $0x148] sm:$0xff]
    %v129 = vld [vmem:[%s2 + $0x150] sm:$0xff]
    %v130 = vld [vmem:[%s2 + $0x158] sm:$0xff]
    %v131 = vld [vmem:[%s2 + $0x160] sm:$0xff]
    %v132 = vld [vmem:[%s2 + $0x168] sm:$0xff]
    %v133 = vld [vmem:[%s2 + $0x170] sm:$0xff]
    %v134 = vld [vmem:[%s2 + $0x178] sm:$0xff]
    %v135 = vld [vmem:[%s2 + $0x180] sm:$0xff]
    %v136 = vld [vmem:[%s2 + $0x188] sm:$0xff]
    %v137 = vld [vmem:[%s2 + $0x190] sm:$0xff]
    %v138 = vld [vmem:[%s2 + $0x198] sm:$0xff]
    %v139 = vld [vmem:[%s2 + $0x1a0] sm:$0xff]
    %v140 = vld [vmem:[%s2 + $0x1a8] sm:$0xff]
    %v141 = vld [vmem:[%s2 + $0x1b0] sm:$0xff]
    %v142 = vld [vmem:[%s2 + $0x1b8] sm:$0xff]
    %v143 = vld [vmem:[%s2 + $0x1c0] sm:$0xff]
    %v144 = vld [vmem:[%s2 + $0x1c8] sm:$0xff]
    %v145 = vld [vmem:[%s2 + $0x1d0] sm:$0xff]
    %v146 = vld [vmem:[%s2 + $0x1d8] sm:$0xff]
    %v147 = vld [vmem:[%s2 + $0x1e0] sm:$0xff]
    %v148 = vld [vmem:[%s2 + $0x1e8] sm:$0xff]
    %v149 = vld [vmem:[%s2 + $0x1f0] sm:$0xff]
    %v150 = vld [vmem:[%s2 + $0x1f8] sm:$0xff]
    %151 = vmatprep.subr.mxu0 %v88
    %152 = vmatpush1.msra.mxu0 %v87
    %153 = vmatprep.subr.mxu0 %v92
    %154 = vmatpush1.msra.mxu0 %v91
    %155 = vmatprep.subr.mxu0 %v96
    %156 = vmatpush1.msra.mxu0 %v95
    %157 = vmatprep.subr.mxu0 %v100
    %158 = vmatpush1.msra.mxu0 %v99
    %159 = vmatprep.subr.mxu0 %v104
    %160 = vmatpush1.msra.mxu0 %v103
    %161 = vmatprep.subr.mxu0 %v108
    %162 = vmatpush1.msra.mxu0 %v107
    %163 = vmatprep.subr.mxu0 %v112
    %164 = vmatpush1.msra.mxu0 %v111
    %165 = vmatprep.subr.mxu0 %v116
    %166 = vmatpush1.msra.mxu0 %v115
    %167 = vmatprep.subr.mxu0 %v120
    %168 = vmatpush1.msra.mxu0 %v119
    %169 = vmatprep.subr.mxu0 %v124
    %170 = vmatpush1.msra.mxu0 %v123
    %171 = vmatprep.subr.mxu0 %v128
    %172 = vmatpush1.msra.mxu0 %v127
    %173 = vmatprep.subr.mxu0 %v132
    %174 = vmatpush1.msra.mxu0 %v131
    %175 = vmatprep.subr.mxu0 %v136
    %176 = vmatpush1.msra.mxu0 %v135
    %177 = vmatprep.subr.mxu0 %v140
    %178 = vmatpush1.msra.mxu0 %v139
    %179 = vmatprep.subr.mxu0 %v144
    %180 = vmatpush1.msra.mxu0 %v143
    %181 = vmatprep.subr.mxu0 %v148
    %182 = vmatpush1.msra.mxu0 %v147
    %183 = vmatprep.subr.mxu0 0.0
    %184 = vmatpush1.msra.mxu0 0.0
    %185 = vmatprep.subr.mxu0 0.0
    %186 = vmatpush1.msra.mxu0 0.0
    %187 = vmatprep.subr.mxu0 0.0
    %188 = vmatpush1.msra.mxu0 0.0
    %189 = vmatprep.subr.mxu0 0.0
    %190 = vmatpush1.msra.mxu0 0.0
    %191 = vmatprep.subr.mxu0 0.0
    %192 = vmatpush1.msra.mxu0 0.0
    %193 = vmatprep.subr.mxu0 0.0
    %194 = vmatpush1.msra.mxu0 0.0
    %195 = vmatprep.subr.mxu0 0.0
    %196 = vmatpush1.msra.mxu0 0.0
    %197 = vmatprep.subr.mxu0 0.0
    %198 = vmatpush1.msra.mxu0 0.0
    %199 = vmatprep.subr.mxu0 0.0
    %200 = vmatpush1.msra.mxu0 0.0
    %201 = vmatprep.subr.mxu0 0.0
    %202 = vmatpush1.msra.mxu0 0.0
    %203 = vmatprep.subr.mxu0 0.0
    %204 = vmatpush1.msra.mxu0 0.0
    %205 = vmatprep.subr.mxu0 0.0
    %206 = vmatpush1.msra.mxu0 0.0
    %207 = vmatprep.subr.mxu0 0.0
    %208 = vmatpush1.msra.mxu0 0.0
    %209 = vmatprep.subr.mxu0 0.0
    %210 = vmatpush1.msra.mxu0 0.0
    %211 = vmatprep.subr.mxu0 0.0
    %212 = vmatpush1.msra.mxu0 0.0
    %213 = vmatprep.subr.mxu0 0.0
    %214 = vmatpush1.msra.mxu0 0.0
    %215 = vmatprep.mubr.f32.mxu0 0.0
    %216 = vmatmul.mubr.f32.gmra.mrb[0].mxu0 0.0
    %v217 = vpop.f32.mrb[0].mxu0
    %v218 = vadd.f32 0.0, %v217
    %v219 = vpop.f32.mrb[0].mxu0
    %v220 = vadd.f32 0.0, %v219
    %221 = vdwg.mxu0
    %222 = vmatprep.subr.mxu0 %v90
    %223 = vmatpush1.msra.mxu0 %v89
    %224 = vmatprep.subr.mxu0 %v94
    %225 = vmatpush1.msra.mxu0 %v93
    %226 = vmatprep.subr.mxu0 %v98
    %227 = vmatpush1.msra.mxu0 %v97
    %228 = vmatprep.subr.mxu0 %v102
    %229 = vmatpush1.msra.mxu0 %v101
    %230 = vmatprep.subr.mxu0 %v106
    %231 = vmatpush1.msra.mxu0 %v105
    %232 = vmatprep.subr.mxu0 %v110
    %233 = vmatpush1.msra.mxu0 %v109
    %234 = vmatprep.subr.mxu0 %v114
    %235 = vmatpush1.msra.mxu0 %v113
    %236 = vmatprep.subr.mxu0 %v118
    %237 = vmatpush1.msra.mxu0 %v117
    %238 = vmatprep.subr.mxu0 %v122
    %239 = vmatpush1.msra.mxu0 %v121
    %240 = vmatprep.subr.mxu0 %v126
    %241 = vmatpush1.msra.mxu0 %v125
    %242 = vmatprep.subr.mxu0 %v130
    %243 = vmatpush1.msra.mxu0 %v129
    %244 = vmatprep.subr.mxu0 %v134
    %245 = vmatpush1.msra.mxu0 %v133
    %246 = vmatprep.subr.mxu0 %v138
    %247 = vmatpush1.msra.mxu0 %v137
    %248 = vmatprep.subr.mxu0 %v142
    %249 = vmatpush1.msra.mxu0 %v141
    %250 = vmatprep.subr.mxu0 %v146
    %251 = vmatpush1.msra.mxu0 %v145
    %252 = vmatprep.subr.mxu0 %v150
    %253 = vmatpush1.msra.mxu0 %v149
    %254 = vmatprep.subr.mxu0 0.0
    %255 = vmatpush1.msra.mxu0 0.0
    %256 = vmatprep.subr.mxu0 0.0
    %257 = vmatpush1.msra.mxu0 0.0
    %258 = vmatprep.subr.mxu0 0.0
    %259 = vmatpush1.msra.mxu0 0.0
    %260 = vmatprep.subr.mxu0 0.0
    %261 = vmatpush1.msra.mxu0 0.0
    %262 = vmatprep.subr.mxu0 0.0
    %263 = vmatpush1.msra.mxu0 0.0
    %264 = vmatprep.subr.mxu0 0.0
    %265 = vmatpush1.msra.mxu0 0.0
    %266 = vmatprep.subr.mxu0 0.0
    %267 = vmatpush1.msra.mxu0 0.0
    %268 = vmatprep.subr.mxu0 0.0
    %269 = vmatpush1.msra.mxu0 0.0
    %270 = vmatprep.subr.mxu0 0.0
    %271 = vmatpush1.msra.mxu0 0.0
    %272 = vmatprep.subr.mxu0 0.0
    %273 = vmatpush1.msra.mxu0 0.0
    %274 = vmatprep.subr.mxu0 0.0
    %275 = vmatpush1.msra.mxu0 0.0
    %276 = vmatprep.subr.mxu0 0.0
    %277 = vmatpush1.msra.mxu0 0.0
    %278 = vmatprep.subr.mxu0 0.0
    %279 = vmatpush1.msra.mxu0 0.0
    %280 = vmatprep.subr.mxu0 0.0
    %281 = vmatpush1.msra.mxu0 0.0
    %282 = vmatprep.subr.mxu0 0.0
    %283 = vmatpush1.msra.mxu0 0.0
    %284 = vmatprep.subr.mxu0 0.0
    %285 = vmatpush1.msra.mxu0 0.0
    %286 = vmatprep.mubr.f32.mxu0 0.0
    %287 = vmatmul.mubr.f32.gmra.mrb[0].mxu0 0.0
    %v288 = vpop.f32.mrb[0].mxu0
    %v289 = vadd.f32 0.0, %v288
    %v290 = vpop.f32.mrb[0].mxu0
    %v291 = vadd.f32 0.0, %v290
    %292 = vdwg.mxu0
    %v297 = vcombine.low %v218, %v220
    %v298 = vcombine.low %v289, %v291
    %v300 = vunpack.c.l.s4 1966171168
    %v301 = vunpack.c.0.s8 %v300
    %v302 = vlaneseq
    %v303 = vshrl.u32 %v302, 7
    %v304 = vsub.s32 %v301, %v303
    %v305 = vrot.slane %v297, %v304
    %v307 = vunpack.c.l.s4 1966171168
    %v308 = vunpack.c.0.s8 %v307
    %v309 = vlaneseq
    %v310 = vshrl.u32 %v309, 7
    %v311 = vsub.s32 %v308, %v310
    %v312 = vrot.slane %v298, %v311
    %v313 = vcombine.low %v305, %v312
    %v315 = vunpack.c.l.s4 1966171168
    %v316 = vunpack.c.0.s8 %v315
    %v317 = vlaneseq
    %v318 = vshrl.u32 %v317, 7
    %v319 = vsub.s32 %v316, %v318
    %v320 = vrot.slane %v313, %v319
    %v322 = vadd.f32 %v86, %v320
    %v323 = vxor.u32 %v322, 2147483648
    %v324 = vmul.f32 %v323, 1.442695
    %v325 = vpow.pop %v324
    %v326 = vadd.f32 %v325, 1.0
    %v327 = vrcp.pop %v326
    %v328 = vmul.f32 1.0, %v327
    %v329 = vtanh.pop %v322
    %v331 = vrot.slane %v328, 1
    %v333 = vmul.f32 %v331, 0.0
    %v335 = vrot.slane %v329, 2
    %v337 = vmul.f32 %v328, %v335
    %v338 = vadd.f32 %v333, %v337
    %v339 = vtanh.pop %v338
    %v340 = vrot.slane %v328, 3
    %v342 = vmul.f32 %v340, %v339
    %s343 = scalar_lea.vmem [#allocation2], 1
    %v344 = vld [vmem:[%s343] ss:$8 sm:$0xf]
    %345 = vmatprep.subr.mxu0 %v88
    %346 = vmatpush1.msra.mxu0 %v87
    %347 = vmatprep.subr.mxu0 %v92
    %348 = vmatpush1.msra.mxu0 %v91
    %349 = vmatprep.subr.mxu0 %v96
    %350 = vmatpush1.msra.mxu0 %v95
    %351 = vmatprep.subr.mxu0 %v100
    %352 = vmatpush1.msra.mxu0 %v99
    %353 = vmatprep.subr.mxu0 %v104
    %354 = vmatpush1.msra.mxu0 %v103
    %355 = vmatprep.subr.mxu0 %v108
    %356 = vmatpush1.msra.mxu0 %v107
    %357 = vmatprep.subr.mxu0 %v112
    %358 = vmatpush1.msra.mxu0 %v111
    %359 = vmatprep.subr.mxu0 %v116
    %360 = vmatpush1.msra.mxu0 %v115
    %361 = vmatprep.subr.mxu0 %v120
    %362 = vmatpush1.msra.mxu0 %v119
    %363 = vmatprep.subr.mxu0 %v124
    %364 = vmatpush1.msra.mxu0 %v123
    %365 = vmatprep.subr.mxu0 %v128
    %366 = vmatpush1.msra.mxu0 %v127
    %367 = vmatprep.subr.mxu0 %v132
    %368 = vmatpush1.msra.mxu0 %v131
    %369 = vmatprep.subr.mxu0 %v136
    %370 = vmatpush1.msra.mxu0 %v135
    %371 = vmatprep.subr.mxu0 %v140
    %372 = vmatpush1.msra.mxu0 %v139
    %373 = vmatprep.subr.mxu0 %v144
    %374 = vmatpush1.msra.mxu0 %v143
    %375 = vmatprep.subr.mxu0 %v148
    %376 = vmatpush1.msra.mxu0 %v147
    %377 = vmatprep.subr.mxu0 0.0
    %378 = vmatpush1.msra.mxu0 0.0
    %379 = vmatprep.subr.mxu0 0.0
    %380 = vmatpush1.msra.mxu0 0.0
    %381 = vmatprep.subr.mxu0 0.0
    %382 = vmatpush1.msra.mxu0 0.0
    %383 = vmatprep.subr.mxu0 0.0
    %384 = vmatpush1.msra.mxu0 0.0
    %385 = vmatprep.subr.mxu0 0.0
    %386 = vmatpush1.msra.mxu0 0.0
    %387 = vmatprep.subr.mxu0 0.0
    %388 = vmatpush1.msra.mxu0 0.0
    %389 = vmatprep.subr.mxu0 0.0
    %390 = vmatpush1.msra.mxu0 0.0
    %391 = vmatprep.subr.mxu0 0.0
    %392 = vmatpush1.msra.mxu0 0.0
    %393 = vmatprep.subr.mxu0 0.0
    %394 = vmatpush1.msra.mxu0 0.0
    %395 = vmatprep.subr.mxu0 0.0
    %396 = vmatpush1.msra.mxu0 0.0
    %397 = vmatprep.subr.mxu0 0.0
    %398 = vmatpush1.msra.mxu0 0.0
    %399 = vmatprep.subr.mxu0 0.0
    %400 = vmatpush1.msra.mxu0 0.0
    %401 = vmatprep.subr.mxu0 0.0
    %402 = vmatpush1.msra.mxu0 0.0
    %403 = vmatprep.subr.mxu0 0.0
    %404 = vmatpush1.msra.mxu0 0.0
    %405 = vmatprep.subr.mxu0 0.0
    %406 = vmatpush1.msra.mxu0 0.0
    %407 = vmatprep.subr.mxu0 0.0
    %408 = vmatpush1.msra.mxu0 0.0
    %409 = vmatprep.mubr.f32.mxu0 0.0
    %410 = vmatmul.mubr.f32.gmra.mrb[0].mxu0 %v342
    %v411 = vpop.f32.mrb[0].mxu0
    %v412 = vadd.f32 0.0, %v411
    %v413 = vpop.f32.mrb[0].mxu0
    %v414 = vadd.f32 0.0, %v413
    %415 = vdwg.mxu0
    %416 = vmatprep.subr.mxu0 %v90
    %417 = vmatpush1.msra.mxu0 %v89
    %418 = vmatprep.subr.mxu0 %v94
    %419 = vmatpush1.msra.mxu0 %v93
    %420 = vmatprep.subr.mxu0 %v98
    %421 = vmatpush1.msra.mxu0 %v97
    %422 = vmatprep.subr.mxu0 %v102
    %423 = vmatpush1.msra.mxu0 %v101
    %424 = vmatprep.subr.mxu0 %v106
    %425 = vmatpush1.msra.mxu0 %v105
    %426 = vmatprep.subr.mxu0 %v110
    %427 = vmatpush1.msra.mxu0 %v109
    %428 = vmatprep.subr.mxu0 %v114
    %429 = vmatpush1.msra.mxu0 %v113
    %430 = vmatprep.subr.mxu0 %v118
    %431 = vmatpush1.msra.mxu0 %v117
    %432 = vmatprep.subr.mxu0 %v122
    %433 = vmatpush1.msra.mxu0 %v121
    %434 = vmatprep.subr.mxu0 %v126
    %435 = vmatpush1.msra.mxu0 %v125
    %436 = vmatprep.subr.mxu0 %v130
    %437 = vmatpush1.msra.mxu0 %v129
    %438 = vmatprep.subr.mxu0 %v134
    %439 = vmatpush1.msra.mxu0 %v133
    %440 = vmatprep.subr.mxu0 %v138
    %441 = vmatpush1.msra.mxu0 %v137
    %442 = vmatprep.subr.mxu0 %v142
    %443 = vmatpush1.msra.mxu0 %v141
    %444 = vmatprep.subr.mxu0 %v146
    %445 = vmatpush1.msra.mxu0 %v145
    %446 = vmatprep.subr.mxu0 %v150
    %447 = vmatpush1.msra.mxu0 %v149
    %448 = vmatprep.subr.mxu0 0.0
    %449 = vmatpush1.msra.mxu0 0.0
    %450 = vmatprep.subr.mxu0 0.0
    %451 = vmatpush1.msra.mxu0 0.0
    %452 = vmatprep.subr.mxu0 0.0
    %453 = vmatpush1.msra.mxu0 0.0
    %454 = vmatprep.subr.mxu0 0.0
    %455 = vmatpush1.msra.mxu0 0.0
    %456 = vmatprep.subr.mxu0 0.0
    %457 = vmatpush1.msra.mxu0 0.0
    %458 = vmatprep.subr.mxu0 0.0
    %459 = vmatpush1.msra.mxu0 0.0
    %460 = vmatprep.subr.mxu0 0.0
    %461 = vmatpush1.msra.mxu0 0.0
    %462 = vmatprep.subr.mxu0 0.0
    %463 = vmatpush1.msra.mxu0 0.0
    %464 = vmatprep.subr.mxu0 0.0
    %465 = vmatpush1.msra.mxu0 0.0
    %466 = vmatprep.subr.mxu0 0.0
    %467 = vmatpush1.msra.mxu0 0.0
    %468 = vmatprep.subr.mxu0 0.0
    %469 = vmatpush1.msra.mxu0 0.0
    %470 = vmatprep.subr.mxu0 0.0
    %471 = vmatpush1.msra.mxu0 0.0
    %472 = vmatprep.subr.mxu0 0.0
    %473 = vmatpush1.msra.mxu0 0.0
    %474 = vmatprep.subr.mxu0 0.0
    %475 = vmatpush1.msra.mxu0 0.0
    %476 = vmatprep.subr.mxu0 0.0
    %477 = vmatpush1.msra.mxu0 0.0
    %478 = vmatprep.subr.mxu0 0.0
    %479 = vmatpush1.msra.mxu0 0.0
    %480 = vmatprep.mubr.f32.mxu0 0.0
    %481 = vmatmul.mubr.f32.gmra.mrb[0].mxu0 %v342
    %v482 = vpop.f32.mrb[0].mxu0
    %v483 = vadd.f32 0.0, %v482
    %v484 = vpop.f32.mrb[0].mxu0
    %v485 = vadd.f32 0.0, %v484
    %486 = vdwg.mxu0
    %v491 = vcombine.low %v412, %v414
    %v492 = vcombine.low %v483, %v485
    %v494 = vunpack.c.l.s4 1966171168
    %v495 = vunpack.c.0.s8 %v494
    %v496 = vlaneseq
    %v497 = vshrl.u32 %v496, 7
    %v498 = vsub.s32 %v495, %v497
    %v499 = vrot.slane %v491, %v498
    %v501 = vunpack.c.l.s4 1966171168
    %v502 = vunpack.c.0.s8 %v501
    %v503 = vlaneseq
    %v504 = vshrl.u32 %v503, 7
    %v505 = vsub.s32 %v502, %v504
    %v506 = vrot.slane %v492, %v505
    %v507 = vcombine.low %v499, %v506
    %v509 = vunpack.c.l.s4 1966171168
    %v510 = vunpack.c.0.s8 %v509
    %v511 = vlaneseq
    %v512 = vshrl.u32 %v511, 7
    %v513 = vsub.s32 %v510, %v512
    %v514 = vrot.slane %v507, %v513
    %v516 = vadd.f32 %v344, %v514
    %v517 = vxor.u32 %v516, 2147483648
    %v518 = vmul.f32 %v517, 1.442695
    %v519 = vpow.pop %v518
    %v520 = vadd.f32 %v519, 1.0
    %v521 = vrcp.pop %v520
    %v522 = vmul.f32 1.0, %v521
    %v523 = vtanh.pop %v516
    %v525 = vrot.slane %v522, 1
    %v527 = vmul.f32 %v525, %v338
    %v529 = vrot.slane %v523, 2
    %v531 = vmul.f32 %v522, %v529
    %v532 = vadd.f32 %v527, %v531
    %v533 = vtanh.pop %v532
    %v534 = vrot.slane %v522, 3
    %v536 = vmul.f32 %v534, %v533
    %s537 = scalar_lea.vmem [#allocation2], 2
    %v538 = vld [vmem:[%s537] ss:$8 sm:$0xf]
    %539 = vmatprep.subr.mxu0 %v88
    %540 = vmatpush1.msra.mxu0 %v87
    %541 = vmatprep.subr.mxu0 %v92
    %542 = vmatpush1.msra.mxu0 %v91
    %543 = vmatprep.subr.mxu0 %v96
    %544 = vmatpush1.msra.mxu0 %v95
    %545 = vmatprep.subr.mxu0 %v100
    %546 = vmatpush1.msra.mxu0 %v99
    %547 = vmatprep.subr.mxu0 %v104
    %548 = vmatpush1.msra.mxu0 %v103
    %549 = vmatprep.subr.mxu0 %v108
    %550 = vmatpush1.msra.mxu0 %v107
    %551 = vmatprep.subr.mxu0 %v112
    %552 = vmatpush1.msra.mxu0 %v111
    %553 = vmatprep.subr.mxu0 %v116
    %554 = vmatpush1.msra.mxu0 %v115
    %555 = vmatprep.subr.mxu0 %v120
    %556 = vmatpush1.msra.mxu0 %v119
    %557 = vmatprep.subr.mxu0 %v124
    %558 = vmatpush1.msra.mxu0 %v123
    %559 = vmatprep.subr.mxu0 %v128
    %560 = vmatpush1.msra.mxu0 %v127
    %561 = vmatprep.subr.mxu0 %v132
    %562 = vmatpush1.msra.mxu0 %v131
    %563 = vmatprep.subr.mxu0 %v136
    %564 = vmatpush1.msra.mxu0 %v135
    %565 = vmatprep.subr.mxu0 %v140
    %566 = vmatpush1.msra.mxu0 %v139
    %567 = vmatprep.subr.mxu0 %v144
    %568 = vmatpush1.msra.mxu0 %v143
    %569 = vmatprep.subr.mxu0 %v148
    %570 = vmatpush1.msra.mxu0 %v147
    %571 = vmatprep.subr.mxu0 0.0
    %572 = vmatpush1.msra.mxu0 0.0
    %573 = vmatprep.subr.mxu0 0.0
    %574 = vmatpush1.msra.mxu0 0.0
    %575 = vmatprep.subr.mxu0 0.0
    %576 = vmatpush1.msra.mxu0 0.0
    %577 = vmatprep.subr.mxu0 0.0
    %578 = vmatpush1.msra.mxu0 0.0
    %579 = vmatprep.subr.mxu0 0.0
    %580 = vmatpush1.msra.mxu0 0.0
    %581 = vmatprep.subr.mxu0 0.0
    %582 = vmatpush1.msra.mxu0 0.0
    %583 = vmatprep.subr.mxu0 0.0
    %584 = vmatpush1.msra.mxu0 0.0
    %585 = vmatprep.subr.mxu0 0.0
    %586 = vmatpush1.msra.mxu0 0.0
    %587 = vmatprep.subr.mxu0 0.0
    %588 = vmatpush1.msra.mxu0 0.0
    %589 = vmatprep.subr.mxu0 0.0
    %590 = vmatpush1.msra.mxu0 0.0
    %591 = vmatprep.subr.mxu0 0.0
    %592 = vmatpush1.msra.mxu0 0.0
    %593 = vmatprep.subr.mxu0 0.0
    %594 = vmatpush1.msra.mxu0 0.0
    %595 = vmatprep.subr.mxu0 0.0
    %596 = vmatpush1.msra.mxu0 0.0
    %597 = vmatprep.subr.mxu0 0.0
    %598 = vmatpush1.msra.mxu0 0.0
    %599 = vmatprep.subr.mxu0 0.0
    %600 = vmatpush1.msra.mxu0 0.0
    %601 = vmatprep.subr.mxu0 0.0
    %602 = vmatpush1.msra.mxu0 0.0
    %603 = vmatprep.mubr.f32.mxu0 0.0
    %604 = vmatmul.mubr.f32.gmra.mrb[0].mxu0 %v536
    %v605 = vpop.f32.mrb[0].mxu0
    %v606 = vadd.f32 0.0, %v605
    %v607 = vpop.f32.mrb[0].mxu0
    %v608 = vadd.f32 0.0, %v607
    %609 = vdwg.mxu0
    %610 = vmatprep.subr.mxu0 %v90
    %611 = vmatpush1.msra.mxu0 %v89
    %612 = vmatprep.subr.mxu0 %v94
    %613 = vmatpush1.msra.mxu0 %v93
    %614 = vmatprep.subr.mxu0 %v98
    %615 = vmatpush1.msra.mxu0 %v97
    %616 = vmatprep.subr.mxu0 %v102
    %617 = vmatpush1.msra.mxu0 %v101
    %618 = vmatprep.subr.mxu0 %v106
    %619 = vmatpush1.msra.mxu0 %v105
    %620 = vmatprep.subr.mxu0 %v110
    %621 = vmatpush1.msra.mxu0 %v109
    %622 = vmatprep.subr.mxu0 %v114
    %623 = vmatpush1.msra.mxu0 %v113
    %624 = vmatprep.subr.mxu0 %v118
    %625 = vmatpush1.msra.mxu0 %v117
    %626 = vmatprep.subr.mxu0 %v122
    %627 = vmatpush1.msra.mxu0 %v121
    %628 = vmatprep.subr.mxu0 %v126
    %629 = vmatpush1.msra.mxu0 %v125
    %630 = vmatprep.subr.mxu0 %v130
    %631 = vmatpush1.msra.mxu0 %v129
    %632 = vmatprep.subr.mxu0 %v134
    %633 = vmatpush1.msra.mxu0 %v133
    %634 = vmatprep.subr.mxu0 %v138
    %635 = vmatpush1.msra.mxu0 %v137
    %636 = vmatprep.subr.mxu0 %v142
    %637 = vmatpush1.msra.mxu0 %v141
    %638 = vmatprep.subr.mxu0 %v146
    %639 = vmatpush1.msra.mxu0 %v145
    %640 = vmatprep.subr.mxu0 %v150
    %641 = vmatpush1.msra.mxu0 %v149
    %642 = vmatprep.subr.mxu0 0.0
    %643 = vmatpush1.msra.mxu0 0.0
    %644 = vmatprep.subr.mxu0 0.0
    %645 = vmatpush1.msra.mxu0 0.0
    %646 = vmatprep.subr.mxu0 0.0
    %647 = vmatpush1.msra.mxu0 0.0
    %648 = vmatprep.subr.mxu0 0.0
    %649 = vmatpush1.msra.mxu0 0.0
    %650 = vmatprep.subr.mxu0 0.0
    %651 = vmatpush1.msra.mxu0 0.0
    %652 = vmatprep.subr.mxu0 0.0
    %653 = vmatpush1.msra.mxu0 0.0
    %654 = vmatprep.subr.mxu0 0.0
    %655 = vmatpush1.msra.mxu0 0.0
    %656 = vmatprep.subr.mxu0 0.0
    %657 = vmatpush1.msra.mxu0 0.0
    %658 = vmatprep.subr.mxu0 0.0
    %659 = vmatpush1.msra.mxu0 0.0
    %660 = vmatprep.subr.mxu0 0.0
    %661 = vmatpush1.msra.mxu0 0.0
    %662 = vmatprep.subr.mxu0 0.0
    %663 = vmatpush1.msra.mxu0 0.0
    %664 = vmatprep.subr.mxu0 0.0
    %665 = vmatpush1.msra.mxu0 0.0
    %666 = vmatprep.subr.mxu0 0.0
    %667 = vmatpush1.msra.mxu0 0.0
    %668 = vmatprep.subr.mxu0 0.0
    %669 = vmatpush1.msra.mxu0 0.0
    %670 = vmatprep.subr.mxu0 0.0
    %671 = vmatpush1.msra.mxu0 0.0
    %672 = vmatprep.subr.mxu0 0.0
    %673 = vmatpush1.msra.mxu0 0.0
    %674 = vmatprep.mubr.f32.mxu0 0.0
    %675 = vmatmul.mubr.f32.gmra.mrb[0].mxu0 %v536
    %v676 = vpop.f32.mrb[0].mxu0
    %v677 = vadd.f32 0.0, %v676
    %v678 = vpop.f32.mrb[0].mxu0
    %v679 = vadd.f32 0.0, %v678
    %680 = vdwg.mxu0
    %v685 = vcombine.low %v606, %v608
    %v686 = vcombine.low %v677, %v679
    %v688 = vunpack.c.l.s4 1966171168
    %v689 = vunpack.c.0.s8 %v688
    %v690 = vlaneseq
    %v691 = vshrl.u32 %v690, 7
    %v692 = vsub.s32 %v689, %v691
    %v693 = vrot.slane %v685, %v692
    %v695 = vunpack.c.l.s4 1966171168
    %v696 = vunpack.c.0.s8 %v695
    %v697 = vlaneseq
    %v698 = vshrl.u32 %v697, 7
    %v699 = vsub.s32 %v696, %v698
    %v700 = vrot.slane %v686, %v699
    %v701 = vcombine.low %v693, %v700
    %v703 = vunpack.c.l.s4 1966171168
    %v704 = vunpack.c.0.s8 %v703
    %v705 = vlaneseq
    %v706 = vshrl.u32 %v705, 7
    %v707 = vsub.s32 %v704, %v706
    %v708 = vrot.slane %v701, %v707
    %v710 = vadd.f32 %v538, %v708
    %v711 = vxor.u32 %v710, 2147483648
    %v712 = vmul.f32 %v711, 1.442695
    %v713 = vpow.pop %v712
    %v714 = vadd.f32 %v713, 1.0
    %v715 = vrcp.pop %v714
    %v716 = vmul.f32 1.0, %v715
    %v717 = vtanh.pop %v710
    %v719 = vrot.slane %v716, 1
    %v721 = vmul.f32 %v719, %v532
    %v723 = vrot.slane %v717, 2
    %v725 = vmul.f32 %v716, %v723
    %v726 = vadd.f32 %v721, %v725
    %v727 = vtanh.pop %v726
    %v728 = vrot.slane %v716, 3
    %v730 = vmul.f32 %v728, %v727
    %s731 = scalar_lea.vmem [#allocation2], 3
    %v732 = vld [vmem:[%s731] ss:$8 sm:$0xf]
    %733 = vmatprep.subr.mxu0 %v88
    %734 = vmatpush1.msra.mxu0 %v87
    %735 = vmatprep.subr.mxu0 %v92
    %736 = vmatpush1.msra.mxu0 %v91
    %737 = vmatprep.subr.mxu0 %v96
    %738 = vmatpush1.msra.mxu0 %v95
    %739 = vmatprep.subr.mxu0 %v100
    %740 = vmatpush1.msra.mxu0 %v99
    %741 = vmatprep.subr.mxu0 %v104
    %742 = vmatpush1.msra.mxu0 %v103
    %743 = vmatprep.subr.mxu0 %v108
    %744 = vmatpush1.msra.mxu0 %v107
    %745 = vmatprep.subr.mxu0 %v112
    %746 = vmatpush1.msra.mxu0 %v111
    %747 = vmatprep.subr.mxu0 %v116
    %748 = vmatpush1.msra.mxu0 %v115
    %749 = vmatprep.subr.mxu0 %v120
    %750 = vmatpush1.msra.mxu0 %v119
    %751 = vmatprep.subr.mxu0 %v124
    %752 = vmatpush1.msra.mxu0 %v123
    %753 = vmatprep.subr.mxu0 %v128
    %754 = vmatpush1.msra.mxu0 %v127
    %755 = vmatprep.subr.mxu0 %v132
    %756 = vmatpush1.msra.mxu0 %v131
    %757 = vmatprep.subr.mxu0 %v136
    %758 = vmatpush1.msra.mxu0 %v135
    %759 = vmatprep.subr.mxu0 %v140
    %760 = vmatpush1.msra.mxu0 %v139
    %761 = vmatprep.subr.mxu0 %v144
    %762 = vmatpush1.msra.mxu0 %v143
    %763 = vmatprep.subr.mxu0 %v148
    %764 = vmatpush1.msra.mxu0 %v147
    %765 = vmatprep.subr.mxu0 0.0
    %766 = vmatpush1.msra.mxu0 0.0
    %767 = vmatprep.subr.mxu0 0.0
    %768 = vmatpush1.msra.mxu0 0.0
    %769 = vmatprep.subr.mxu0 0.0
    %770 = vmatpush1.msra.mxu0 0.0
    %771 = vmatprep.subr.mxu0 0.0
    %772 = vmatpush1.msra.mxu0 0.0
    %773 = vmatprep.subr.mxu0 0.0
    %774 = vmatpush1.msra.mxu0 0.0
    %775 = vmatprep.subr.mxu0 0.0
    %776 = vmatpush1.msra.mxu0 0.0
    %777 = vmatprep.subr.mxu0 0.0
    %778 = vmatpush1.msra.mxu0 0.0
    %779 = vmatprep.subr.mxu0 0.0
    %780 = vmatpush1.msra.mxu0 0.0
    %781 = vmatprep.subr.mxu0 0.0
    %782 = vmatpush1.msra.mxu0 0.0
    %783 = vmatprep.subr.mxu0 0.0
    %784 = vmatpush1.msra.mxu0 0.0
    %785 = vmatprep.subr.mxu0 0.0
    %786 = vmatpush1.msra.mxu0 0.0
    %787 = vmatprep.subr.mxu0 0.0
    %788 = vmatpush1.msra.mxu0 0.0
    %789 = vmatprep.subr.mxu0 0.0
    %790 = vmatpush1.msra.mxu0 0.0
    %791 = vmatprep.subr.mxu0 0.0
    %792 = vmatpush1.msra.mxu0 0.0
    %793 = vmatprep.subr.mxu0 0.0
    %794 = vmatpush1.msra.mxu0 0.0
    %795 = vmatprep.subr.mxu0 0.0
    %796 = vmatpush1.msra.mxu0 0.0
    %797 = vmatprep.mubr.f32.mxu0 0.0
    %798 = vmatmul.mubr.f32.gmra.mrb[0].mxu0 %v730
    %v799 = vpop.f32.mrb[0].mxu0
    %v800 = vadd.f32 0.0, %v799
    %v801 = vpop.f32.mrb[0].mxu0
    %v802 = vadd.f32 0.0, %v801
    %803 = vdwg.mxu0
    %804 = vmatprep.subr.mxu0 %v90
    %805 = vmatpush1.msra.mxu0 %v89
    %806 = vmatprep.subr.mxu0 %v94
    %807 = vmatpush1.msra.mxu0 %v93
    %808 = vmatprep.subr.mxu0 %v98
    %809 = vmatpush1.msra.mxu0 %v97
    %810 = vmatprep.subr.mxu0 %v102
    %811 = vmatpush1.msra.mxu0 %v101
    %812 = vmatprep.subr.mxu0 %v106
    %813 = vmatpush1.msra.mxu0 %v105
    %814 = vmatprep.subr.mxu0 %v110
    %815 = vmatpush1.msra.mxu0 %v109
    %816 = vmatprep.subr.mxu0 %v114
    %817 = vmatpush1.msra.mxu0 %v113
    %818 = vmatprep.subr.mxu0 %v118
    %819 = vmatpush1.msra.mxu0 %v117
    %820 = vmatprep.subr.mxu0 %v122
    %821 = vmatpush1.msra.mxu0 %v121
    %822 = vmatprep.subr.mxu0 %v126
    %823 = vmatpush1.msra.mxu0 %v125
    %824 = vmatprep.subr.mxu0 %v130
    %825 = vmatpush1.msra.mxu0 %v129
    %826 = vmatprep.subr.mxu0 %v134
    %827 = vmatpush1.msra.mxu0 %v133
    %828 = vmatprep.subr.mxu0 %v138
    %829 = vmatpush1.msra.mxu0 %v137
    %830 = vmatprep.subr.mxu0 %v142
    %831 = vmatpush1.msra.mxu0 %v141
    %832 = vmatprep.subr.mxu0 %v146
    %833 = vmatpush1.msra.mxu0 %v145
    %834 = vmatprep.subr.mxu0 %v150
    %835 = vmatpush1.msra.mxu0 %v149
    %836 = vmatprep.subr.mxu0 0.0
    %837 = vmatpush1.msra.mxu0 0.0
    %838 = vmatprep.subr.mxu0 0.0
    %839 = vmatpush1.msra.mxu0 0.0
    %840 = vmatprep.subr.mxu0 0.0
    %841 = vmatpush1.msra.mxu0 0.0
    %842 = vmatprep.subr.mxu0 0.0
    %843 = vmatpush1.msra.mxu0 0.0
    %844 = vmatprep.subr.mxu0 0.0
    %845 = vmatpush1.msra.mxu0 0.0
    %846 = vmatprep.subr.mxu0 0.0
    %847 = vmatpush1.msra.mxu0 0.0
    %848 = vmatprep.subr.mxu0 0.0
    %849 = vmatpush1.msra.mxu0 0.0
    %850 = vmatprep.subr.mxu0 0.0
    %851 = vmatpush1.msra.mxu0 0.0
    %852 = vmatprep.subr.mxu0 0.0
    %853 = vmatpush1.msra.mxu0 0.0
    %854 = vmatprep.subr.mxu0 0.0
    %855 = vmatpush1.msra.mxu0 0.0
    %856 = vmatprep.subr.mxu0 0.0
    %857 = vmatpush1.msra.mxu0 0.0
    %858 = vmatprep.subr.mxu0 0.0
    %859 = vmatpush1.msra.mxu0 0.0
    %860 = vmatprep.subr.mxu0 0.0
    %861 = vmatpush1.msra.mxu0 0.0
    %862 = vmatprep.subr.mxu0 0.0
    %863 = vmatpush1.msra.mxu0 0.0
    %864 = vmatprep.subr.mxu0 0.0
    %865 = vmatpush1.msra.mxu0 0.0
    %866 = vmatprep.subr.mxu0 0.0
    %867 = vmatpush1.msra.mxu0 0.0
    %868 = vmatprep.mubr.f32.mxu0 0.0
    %869 = vmatmul.mubr.f32.gmra.mrb[0].mxu0 %v730
    %v870 = vpop.f32.mrb[0].mxu0
    %v871 = vadd.f32 0.0, %v870
    %v872 = vpop.f32.mrb[0].mxu0
    %v873 = vadd.f32 0.0, %v872
    %874 = vdwg.mxu0
    %v879 = vcombine.low %v800, %v802
    %v880 = vcombine.low %v871, %v873
    %v882 = vunpack.c.l.s4 1966171168
    %v883 = vunpack.c.0.s8 %v882
    %v884 = vlaneseq
    %v885 = vshrl.u32 %v884, 7
    %v886 = vsub.s32 %v883, %v885
    %v887 = vrot.slane %v879, %v886
    %v889 = vunpack.c.l.s4 1966171168
    %v890 = vunpack.c.0.s8 %v889
    %v891 = vlaneseq
    %v892 = vshrl.u32 %v891, 7
    %v893 = vsub.s32 %v890, %v892
    %v894 = vrot.slane %v880, %v893
    %v895 = vcombine.low %v887, %v894
    %v897 = vunpack.c.l.s4 1966171168
    %v898 = vunpack.c.0.s8 %v897
    %v899 = vlaneseq
    %v900 = vshrl.u32 %v899, 7
    %v901 = vsub.s32 %v898, %v900
    %v902 = vrot.slane %v895, %v901
    %v904 = vadd.f32 %v732, %v902
    %v905 = vxor.u32 %v904, 2147483648
    %v906 = vmul.f32 %v905, 1.442695
    %v907 = vpow.pop %v906
    %v908 = vadd.f32 %v907, 1.0
    %v909 = vrcp.pop %v908
    %v910 = vmul.f32 1.0, %v909
    %v911 = vtanh.pop %v904
    %v913 = vrot.slane %v910, 1
    %v915 = vmul.f32 %v913, %v726
    %v917 = vrot.slane %v911, 2
    %v919 = vmul.f32 %v910, %v917
    %v920 = vadd.f32 %v915, %v919
    %v921 = vtanh.pop %v920
    %v922 = vrot.slane %v910, 3
    %v924 = vmul.f32 %v922, %v921
    %s925 = scalar_lea.vmem [#allocation2], 4
    %v926 = vld [vmem:[%s925] ss:$8 sm:$0xf]
    %927 = vmatprep.subr.mxu0 %v88
    %928 = vmatpush1.msra.mxu0 %v87
    %929 = vmatprep.subr.mxu0 %v92
    %930 = vmatpush1.msra.mxu0 %v91
    %931 = vmatprep.subr.mxu0 %v96
    %932 = vmatpush1.msra.mxu0 %v95
    %933 = vmatprep.subr.mxu0 %v100
    %934 = vmatpush1.msra.mxu0 %v99
    %935 = vmatprep.subr.mxu0 %v104
    %936 = vmatpush1.msra.mxu0 %v103
    %937 = vmatprep.subr.mxu0 %v108
    %938 = vmatpush1.msra.mxu0 %v107
    %939 = vmatprep.subr.mxu0 %v112
    %940 = vmatpush1.msra.mxu0 %v111
    %941 = vmatprep.subr.mxu0 %v116
    %942 = vmatpush1.msra.mxu0 %v115
    %943 = vmatprep.subr.mxu0 %v120
    %944 = vmatpush1.msra.mxu0 %v119
    %945 = vmatprep.subr.mxu0 %v124
    %946 = vmatpush1.msra.mxu0 %v123
    %947 = vmatprep.subr.mxu0 %v128
    %948 = vmatpush1.msra.mxu0 %v127
    %949 = vmatprep.subr.mxu0 %v132
    %950 = vmatpush1.msra.mxu0 %v131
    %951 = vmatprep.subr.mxu0 %v136
    %952 = vmatpush1.msra.mxu0 %v135
    %953 = vmatprep.subr.mxu0 %v140
    %954 = vmatpush1.msra.mxu0 %v139
    %955 = vmatprep.subr.mxu0 %v144
    %956 = vmatpush1.msra.mxu0 %v143
    %957 = vmatprep.subr.mxu0 %v148
    %958 = vmatpush1.msra.mxu0 %v147
    %959 = vmatprep.subr.mxu0 0.0
    %960 = vmatpush1.msra.mxu0 0.0
    %961 = vmatprep.subr.mxu0 0.0
    %962 = vmatpush1.msra.mxu0 0.0
    %963 = vmatprep.subr.mxu0 0.0
    %964 = vmatpush1.msra.mxu0 0.0
    %965 = vmatprep.subr.mxu0 0.0
    %966 = vmatpush1.msra.mxu0 0.0
    %967 = vmatprep.subr.mxu0 0.0
    %968 = vmatpush1.msra.mxu0 0.0
    %969 = vmatprep.subr.mxu0 0.0
    %970 = vmatpush1.msra.mxu0 0.0
    %971 = vmatprep.subr.mxu0 0.0
    %972 = vmatpush1.msra.mxu0 0.0
    %973 = vmatprep.subr.mxu0 0.0
    %974 = vmatpush1.msra.mxu0 0.0
    %975 = vmatprep.subr.mxu0 0.0
    %976 = vmatpush1.msra.mxu0 0.0
    %977 = vmatprep.subr.mxu0 0.0
    %978 = vmatpush1.msra.mxu0 0.0
    %979 = vmatprep.subr.mxu0 0.0
    %980 = vmatpush1.msra.mxu0 0.0
    %981 = vmatprep.subr.mxu0 0.0
    %982 = vmatpush1.msra.mxu0 0.0
    %983 = vmatprep.subr.mxu0 0.0
    %984 = vmatpush1.msra.mxu0 0.0
    %985 = vmatprep.subr.mxu0 0.0
    %986 = vmatpush1.msra.mxu0 0.0
    %987 = vmatprep.subr.mxu0 0.0
    %988 = vmatpush1.msra.mxu0 0.0
    %989 = vmatprep.subr.mxu0 0.0
    %990 = vmatpush1.msra.mxu0 0.0
    %991 = vmatprep.mubr.f32.mxu0 0.0
    %992 = vmatmul.mubr.f32.gmra.mrb[0].mxu0 %v924
    %v993 = vpop.f32.mrb[0].mxu0
    %v994 = vadd.f32 0.0, %v993
    %v995 = vpop.f32.mrb[0].mxu0
    %v996 = vadd.f32 0.0, %v995
    %997 = vdwg.mxu0
    %998 = vmatprep.subr.mxu0 %v90
    %999 = vmatpush1.msra.mxu0 %v89
    %1000 = vmatprep.subr.mxu0 %v94
    %1001 = vmatpush1.msra.mxu0 %v93
    %1002 = vmatprep.subr.mxu0 %v98
    %1003 = vmatpush1.msra.mxu0 %v97
    %1004 = vmatprep.subr.mxu0 %v102
    %1005 = vmatpush1.msra.mxu0 %v101
    %1006 = vmatprep.subr.mxu0 %v106
    %1007 = vmatpush1.msra.mxu0 %v105
    %1008 = vmatprep.subr.mxu0 %v110
    %1009 = vmatpush1.msra.mxu0 %v109
    %1010 = vmatprep.subr.mxu0 %v114
    %1011 = vmatpush1.msra.mxu0 %v113
    %1012 = vmatprep.subr.mxu0 %v118
    %1013 = vmatpush1.msra.mxu0 %v117
    %1014 = vmatprep.subr.mxu0 %v122
    %1015 = vmatpush1.msra.mxu0 %v121
    %1016 = vmatprep.subr.mxu0 %v126
    %1017 = vmatpush1.msra.mxu0 %v125
    %1018 = vmatprep.subr.mxu0 %v130
    %1019 = vmatpush1.msra.mxu0 %v129
    %1020 = vmatprep.subr.mxu0 %v134
    %1021 = vmatpush1.msra.mxu0 %v133
    %1022 = vmatprep.subr.mxu0 %v138
    %1023 = vmatpush1.msra.mxu0 %v137
    %1024 = vmatprep.subr.mxu0 %v142
    %1025 = vmatpush1.msra.mxu0 %v141
    %1026 = vmatprep.subr.mxu0 %v146
    %1027 = vmatpush1.msra.mxu0 %v145
    %1028 = vmatprep.subr.mxu0 %v150
    %1029 = vmatpush1.msra.mxu0 %v149
    %1030 = vmatprep.subr.mxu0 0.0
    %1031 = vmatpush1.msra.mxu0 0.0
    %1032 = vmatprep.subr.mxu0 0.0
    %1033 = vmatpush1.msra.mxu0 0.0
    %1034 = vmatprep.subr.mxu0 0.0
    %1035 = vmatpush1.msra.mxu0 0.0
    %1036 = vmatprep.subr.mxu0 0.0
    %1037 = vmatpush1.msra.mxu0 0.0
    %1038 = vmatprep.subr.mxu0 0.0
    %1039 = vmatpush1.msra.mxu0 0.0
    %1040 = vmatprep.subr.mxu0 0.0
    %1041 = vmatpush1.msra.mxu0 0.0
    %1042 = vmatprep.subr.mxu0 0.0
    %1043 = vmatpush1.msra.mxu0 0.0
    %1044 = vmatprep.subr.mxu0 0.0
    %1045 = vmatpush1.msra.mxu0 0.0
    %1046 = vmatprep.subr.mxu0 0.0
    %1047 = vmatpush1.msra.mxu0 0.0
    %1048 = vmatprep.subr.mxu0 0.0
    %1049 = vmatpush1.msra.mxu0 0.0
    %1050 = vmatprep.subr.mxu0 0.0
    %1051 = vmatpush1.msra.mxu0 0.0
    %1052 = vmatprep.subr.mxu0 0.0
    %1053 = vmatpush1.msra.mxu0 0.0
    %1054 = vmatprep.subr.mxu0 0.0
    %1055 = vmatpush1.msra.mxu0 0.0
    %1056 = vmatprep.subr.mxu0 0.0
    %1057 = vmatpush1.msra.mxu0 0.0
    %1058 = vmatprep.subr.mxu0 0.0
    %1059 = vmatpush1.msra.mxu0 0.0
    %1060 = vmatprep.subr.mxu0 0.0
    %1061 = vmatpush1.msra.mxu0 0.0
    %1062 = vmatprep.mubr.f32.mxu0 0.0
    %1063 = vmatmul.mubr.f32.gmra.mrb[0].mxu0 %v924
    %v1064 = vpop.f32.mrb[0].mxu0
    %v1065 = vadd.f32 0.0, %v1064
    %v1066 = vpop.f32.mrb[0].mxu0
    %v1067 = vadd.f32 0.0, %v1066
    %1068 = vdwg.mxu0
    %v1073 = vcombine.low %v994, %v996
    %v1074 = vcombine.low %v1065, %v1067
    %v1076 = vunpack.c.l.s4 1966171168
    %v1077 = vunpack.c.0.s8 %v1076
    %v1078 = vlaneseq
    %v1079 = vshrl.u32 %v1078, 7
    %v1080 = vsub.s32 %v1077, %v1079
    %v1081 = vrot.slane %v1073, %v1080
    %v1083 = vunpack.c.l.s4 1966171168
    %v1084 = vunpack.c.0.s8 %v1083
    %v1085 = vlaneseq
    %v1086 = vshrl.u32 %v1085, 7
    %v1087 = vsub.s32 %v1084, %v1086
    %v1088 = vrot.slane %v1074, %v1087
    %v1089 = vcombine.low %v1081, %v1088
    %v1091 = vunpack.c.l.s4 1966171168
    %v1092 = vunpack.c.0.s8 %v1091
    %v1093 = vlaneseq
    %v1094 = vshrl.u32 %v1093, 7
    %v1095 = vsub.s32 %v1092, %v1094
    %v1096 = vrot.slane %v1089, %v1095
    %v1098 = vadd.f32 %v926, %v1096
    %v1099 = vxor.u32 %v1098, 2147483648
    %v1100 = vmul.f32 %v1099, 1.442695
    %v1101 = vpow.pop %v1100
    %v1102 = vadd.f32 %v1101, 1.0
    %v1103 = vrcp.pop %v1102
    %v1104 = vmul.f32 1.0, %v1103
    %v1105 = vtanh.pop %v1098
    %v1107 = vrot.slane %v1104, 1
    %v1109 = vmul.f32 %v1107, %v920
    %v1111 = vrot.slane %v1105, 2
    %v1113 = vmul.f32 %v1104, %v1111
    %v1114 = vadd.f32 %v1109, %v1113
    %v1115 = vtanh.pop %v1114
    %v1116 = vrot.slane %v1104, 3
    %v1118 = vmul.f32 %v1116, %v1115
    %s1119 = scalar_lea.vmem [#allocation2], 5
    %v1120 = vld [vmem:[%s1119] ss:$8 sm:$0xf]
    %1121 = vmatprep.subr.mxu0 %v88
    %1122 = vmatpush1.msra.mxu0 %v87
    %1123 = vmatprep.subr.mxu0 %v92
    %1124 = vmatpush1.msra.mxu0 %v91
    %1125 = vmatprep.subr.mxu0 %v96
    %1126 = vmatpush1.msra.mxu0 %v95
    %1127 = vmatprep.subr.mxu0 %v100
    %1128 = vmatpush1.msra.mxu0 %v99
    %1129 = vmatprep.subr.mxu0 %v104
    %1130 = vmatpush1.msra.mxu0 %v103
    %1131 = vmatprep.subr.mxu0 %v108
    %1132 = vmatpush1.msra.mxu0 %v107
    %1133 = vmatprep.subr.mxu0 %v112
    %1134 = vmatpush1.msra.mxu0 %v111
    %1135 = vmatprep.subr.mxu0 %v116
    %1136 = vmatpush1.msra.mxu0 %v115
    %1137 = vmatprep.subr.mxu0 %v120
    %1138 = vmatpush1.msra.mxu0 %v119
    %1139 = vmatprep.subr.mxu0 %v124
    %1140 = vmatpush1.msra.mxu0 %v123
    %1141 = vmatprep.subr.mxu0 %v128
    %1142 = vmatpush1.msra.mxu0 %v127
    %1143 = vmatprep.subr.mxu0 %v132
    %1144 = vmatpush1.msra.mxu0 %v131
    %1145 = vmatprep.subr.mxu0 %v136
    %1146 = vmatpush1.msra.mxu0 %v135
    %1147 = vmatprep.subr.mxu0 %v140
    %1148 = vmatpush1.msra.mxu0 %v139
    %1149 = vmatprep.subr.mxu0 %v144
    %1150 = vmatpush1.msra.mxu0 %v143
    %1151 = vmatprep.subr.mxu0 %v148
    %1152 = vmatpush1.msra.mxu0 %v147
    %1153 = vmatprep.subr.mxu0 0.0
    %1154 = vmatpush1.msra.mxu0 0.0
    %1155 = vmatprep.subr.mxu0 0.0
    %1156 = vmatpush1.msra.mxu0 0.0
    %1157 = vmatprep.subr.mxu0 0.0
    %1158 = vmatpush1.msra.mxu0 0.0
    %1159 = vmatprep.subr.mxu0 0.0
    %1160 = vmatpush1.msra.mxu0 0.0
    %1161 = vmatprep.subr.mxu0 0.0
    %1162 = vmatpush1.msra.mxu0 0.0
    %1163 = vmatprep.subr.mxu0 0.0
    %1164 = vmatpush1.msra.mxu0 0.0
    %1165 = vmatprep.subr.mxu0 0.0
    %1166 = vmatpush1.msra.mxu0 0.0
    %1167 = vmatprep.subr.mxu0 0.0
    %1168 = vmatpush1.msra.mxu0 0.0
    %1169 = vmatprep.subr.mxu0 0.0
    %1170 = vmatpush1.msra.mxu0 0.0
    %1171 = vmatprep.subr.mxu0 0.0
    %1172 = vmatpush1.msra.mxu0 0.0
    %1173 = vmatprep.subr.mxu0 0.0
    %1174 = vmatpush1.msra.mxu0 0.0
    %1175 = vmatprep.subr.mxu0 0.0
    %1176 = vmatpush1.msra.mxu0 0.0
    %1177 = vmatprep.subr.mxu0 0.0
    %1178 = vmatpush1.msra.mxu0 0.0
    %1179 = vmatprep.subr.mxu0 0.0
    %1180 = vmatpush1.msra.mxu0 0.0
    %1181 = vmatprep.subr.mxu0 0.0
    %1182 = vmatpush1.msra.mxu0 0.0
    %1183 = vmatprep.subr.mxu0 0.0
    %1184 = vmatpush1.msra.mxu0 0.0
    %1185 = vmatprep.mubr.f32.mxu0 0.0
    %1186 = vmatmul.mubr.f32.gmra.mrb[0].mxu0 %v1118
    %v1187 = vpop.f32.mrb[0].mxu0
    %v1188 = vadd.f32 0.0, %v1187
    %v1189 = vpop.f32.mrb[0].mxu0
    %v1190 = vadd.f32 0.0, %v1189
    %1191 = vdwg.mxu0
    %1192 = vmatprep.subr.mxu0 %v90
    %1193 = vmatpush1.msra.mxu0 %v89
    %1194 = vmatprep.subr.mxu0 %v94
    %1195 = vmatpush1.msra.mxu0 %v93
    %1196 = vmatprep.subr.mxu0 %v98
    %1197 = vmatpush1.msra.mxu0 %v97
    %1198 = vmatprep.subr.mxu0 %v102
    %1199 = vmatpush1.msra.mxu0 %v101
    %1200 = vmatprep.subr.mxu0 %v106
    %1201 = vmatpush1.msra.mxu0 %v105
    %1202 = vmatprep.subr.mxu0 %v110
    %1203 = vmatpush1.msra.mxu0 %v109
    %1204 = vmatprep.subr.mxu0 %v114
    %1205 = vmatpush1.msra.mxu0 %v113
    %1206 = vmatprep.subr.mxu0 %v118
    %1207 = vmatpush1.msra.mxu0 %v117
    %1208 = vmatprep.subr.mxu0 %v122
    %1209 = vmatpush1.msra.mxu0 %v121
    %1210 = vmatprep.subr.mxu0 %v126
    %1211 = vmatpush1.msra.mxu0 %v125
    %1212 = vmatprep.subr.mxu0 %v130
    %1213 = vmatpush1.msra.mxu0 %v129
    %1214 = vmatprep.subr.mxu0 %v134
    %1215 = vmatpush1.msra.mxu0 %v133
    %1216 = vmatprep.subr.mxu0 %v138
    %1217 = vmatpush1.msra.mxu0 %v137
    %1218 = vmatprep.subr.mxu0 %v142
    %1219 = vmatpush1.msra.mxu0 %v141
    %1220 = vmatprep.subr.mxu0 %v146
    %1221 = vmatpush1.msra.mxu0 %v145
    %1222 = vmatprep.subr.mxu0 %v150
    %1223 = vmatpush1.msra.mxu0 %v149
    %1224 = vmatprep.subr.mxu0 0.0
    %1225 = vmatpush1.msra.mxu0 0.0
    %1226 = vmatprep.subr.mxu0 0.0
    %1227 = vmatpush1.msra.mxu0 0.0
    %1228 = vmatprep.subr.mxu0 0.0
    %1229 = vmatpush1.msra.mxu0 0.0
    %1230 = vmatprep.subr.mxu0 0.0
    %1231 = vmatpush1.msra.mxu0 0.0
    %1232 = vmatprep.subr.mxu0 0.0
    %1233 = vmatpush1.msra.mxu0 0.0
    %1234 = vmatprep.subr.mxu0 0.0
    %1235 = vmatpush1.msra.mxu0 0.0
    %1236 = vmatprep.subr.mxu0 0.0
    %1237 = vmatpush1.msra.mxu0 0.0
    %1238 = vmatprep.subr.mxu0 0.0
    %1239 = vmatpush1.msra.mxu0 0.0
    %1240 = vmatprep.subr.mxu0 0.0
    %1241 = vmatpush1.msra.mxu0 0.0
    %1242 = vmatprep.subr.mxu0 0.0
    %1243 = vmatpush1.msra.mxu0 0.0
    %1244 = vmatprep.subr.mxu0 0.0
    %1245 = vmatpush1.msra.mxu0 0.0
    %1246 = vmatprep.subr.mxu0 0.0
    %1247 = vmatpush1.msra.mxu0 0.0
    %1248 = vmatprep.subr.mxu0 0.0
    %1249 = vmatpush1.msra.mxu0 0.0
    %1250 = vmatprep.subr.mxu0 0.0
    %1251 = vmatpush1.msra.mxu0 0.0
    %1252 = vmatprep.subr.mxu0 0.0
    %1253 = vmatpush1.msra.mxu0 0.0
    %1254 = vmatprep.subr.mxu0 0.0
    %1255 = vmatpush1.msra.mxu0 0.0
    %1256 = vmatprep.mubr.f32.mxu0 0.0
    %1257 = vmatmul.mubr.f32.gmra.mrb[0].mxu0 %v1118
    %v1258 = vpop.f32.mrb[0].mxu0
    %v1259 = vadd.f32 0.0, %v1258
    %v1260 = vpop.f32.mrb[0].mxu0
    %v1261 = vadd.f32 0.0, %v1260
    %1262 = vdwg.mxu0
    %v1267 = vcombine.low %v1188, %v1190
    %v1268 = vcombine.low %v1259, %v1261
    %v1270 = vunpack.c.l.s4 1966171168
    %v1271 = vunpack.c.0.s8 %v1270
    %v1272 = vlaneseq
    %v1273 = vshrl.u32 %v1272, 7
    %v1274 = vsub.s32 %v1271, %v1273
    %v1275 = vrot.slane %v1267, %v1274
    %v1277 = vunpack.c.l.s4 1966171168
    %v1278 = vunpack.c.0.s8 %v1277
    %v1279 = vlaneseq
    %v1280 = vshrl.u32 %v1279, 7
    %v1281 = vsub.s32 %v1278, %v1280
    %v1282 = vrot.slane %v1268, %v1281
    %v1283 = vcombine.low %v1275, %v1282
    %v1285 = vunpack.c.l.s4 1966171168
    %v1286 = vunpack.c.0.s8 %v1285
    %v1287 = vlaneseq
    %v1288 = vshrl.u32 %v1287, 7
    %v1289 = vsub.s32 %v1286, %v1288
    %v1290 = vrot.slane %v1283, %v1289
    %v1292 = vadd.f32 %v1120, %v1290
    %v1293 = vxor.u32 %v1292, 2147483648
    %v1294 = vmul.f32 %v1293, 1.442695
    %v1295 = vpow.pop %v1294
    %v1296 = vadd.f32 %v1295, 1.0
    %v1297 = vrcp.pop %v1296
    %v1298 = vmul.f32 1.0, %v1297
    %v1299 = vtanh.pop %v1292
    %v1301 = vrot.slane %v1298, 1
    %v1303 = vmul.f32 %v1301, %v1114
    %v1305 = vrot.slane %v1299, 2
    %v1307 = vmul.f32 %v1298, %v1305
    %v1308 = vadd.f32 %v1303, %v1307
    %v1309 = vtanh.pop %v1308
    %v1310 = vrot.slane %v1298, 3
    %v1312 = vmul.f32 %v1310, %v1309
    %s1313 = scalar_lea.vmem [#allocation2], 6
    %v1314 = vld [vmem:[%s1313] ss:$8 sm:$0xf]
    %1315 = vmatprep.subr.mxu0 %v88
    %1316 = vmatpush1.msra.mxu0 %v87
    %1317 = vmatprep.subr.mxu0 %v92
    %1318 = vmatpush1.msra.mxu0 %v91
    %1319 = vmatprep.subr.mxu0 %v96
    %1320 = vmatpush1.msra.mxu0 %v95
    %1321 = vmatprep.subr.mxu0 %v100
    %1322 = vmatpush1.msra.mxu0 %v99
    %1323 = vmatprep.subr.mxu0 %v104
    %1324 = vmatpush1.msra.mxu0 %v103
    %1325 = vmatprep.subr.mxu0 %v108
    %1326 = vmatpush1.msra.mxu0 %v107
    %1327 = vmatprep.subr.mxu0 %v112
    %1328 = vmatpush1.msra.mxu0 %v111
    %1329 = vmatprep.subr.mxu0 %v116
    %1330 = vmatpush1.msra.mxu0 %v115
    %1331 = vmatprep.subr.mxu0 %v120
    %1332 = vmatpush1.msra.mxu0 %v119
    %1333 = vmatprep.subr.mxu0 %v124
    %1334 = vmatpush1.msra.mxu0 %v123
    %1335 = vmatprep.subr.mxu0 %v128
    %1336 = vmatpush1.msra.mxu0 %v127
    %1337 = vmatprep.subr.mxu0 %v132
    %1338 = vmatpush1.msra.mxu0 %v131
    %1339 = vmatprep.subr.mxu0 %v136
    %1340 = vmatpush1.msra.mxu0 %v135
    %1341 = vmatprep.subr.mxu0 %v140
    %1342 = vmatpush1.msra.mxu0 %v139
    %1343 = vmatprep.subr.mxu0 %v144
    %1344 = vmatpush1.msra.mxu0 %v143
    %1345 = vmatprep.subr.mxu0 %v148
    %1346 = vmatpush1.msra.mxu0 %v147
    %1347 = vmatprep.subr.mxu0 0.0
    %1348 = vmatpush1.msra.mxu0 0.0
    %1349 = vmatprep.subr.mxu0 0.0
    %1350 = vmatpush1.msra.mxu0 0.0
    %1351 = vmatprep.subr.mxu0 0.0
    %1352 = vmatpush1.msra.mxu0 0.0
    %1353 = vmatprep.subr.mxu0 0.0
    %1354 = vmatpush1.msra.mxu0 0.0
    %1355 = vmatprep.subr.mxu0 0.0
    %1356 = vmatpush1.msra.mxu0 0.0
    %1357 = vmatprep.subr.mxu0 0.0
    %1358 = vmatpush1.msra.mxu0 0.0
    %1359 = vmatprep.subr.mxu0 0.0
    %1360 = vmatpush1.msra.mxu0 0.0
    %1361 = vmatprep.subr.mxu0 0.0
    %1362 = vmatpush1.msra.mxu0 0.0
    %1363 = vmatprep.subr.mxu0 0.0
    %1364 = vmatpush1.msra.mxu0 0.0
    %1365 = vmatprep.subr.mxu0 0.0
    %1366 = vmatpush1.msra.mxu0 0.0
    %1367 = vmatprep.subr.mxu0 0.0
    %1368 = vmatpush1.msra.mxu0 0.0
    %1369 = vmatprep.subr.mxu0 0.0
    %1370 = vmatpush1.msra.mxu0 0.0
    %1371 = vmatprep.subr.mxu0 0.0
    %1372 = vmatpush1.msra.mxu0 0.0
    %1373 = vmatprep.subr.mxu0 0.0
    %1374 = vmatpush1.msra.mxu0 0.0
    %1375 = vmatprep.subr.mxu0 0.0
    %1376 = vmatpush1.msra.mxu0 0.0
    %1377 = vmatprep.subr.mxu0 0.0
    %1378 = vmatpush1.msra.mxu0 0.0
    %1379 = vmatprep.mubr.f32.mxu0 0.0
    %1380 = vmatmul.mubr.f32.gmra.mrb[0].mxu0 %v1312
    %v1381 = vpop.f32.mrb[0].mxu0
    %v1382 = vadd.f32 0.0, %v1381
    %v1383 = vpop.f32.mrb[0].mxu0
    %v1384 = vadd.f32 0.0, %v1383
    %1385 = vdwg.mxu0
    %1386 = vmatprep.subr.mxu0 %v90
    %1387 = vmatpush1.msra.mxu0 %v89
    %1388 = vmatprep.subr.mxu0 %v94
    %1389 = vmatpush1.msra.mxu0 %v93
    %1390 = vmatprep.subr.mxu0 %v98
    %1391 = vmatpush1.msra.mxu0 %v97
    %1392 = vmatprep.subr.mxu0 %v102
    %1393 = vmatpush1.msra.mxu0 %v101
    %1394 = vmatprep.subr.mxu0 %v106
    %1395 = vmatpush1.msra.mxu0 %v105
    %1396 = vmatprep.subr.mxu0 %v110
    %1397 = vmatpush1.msra.mxu0 %v109
    %1398 = vmatprep.subr.mxu0 %v114
    %1399 = vmatpush1.msra.mxu0 %v113
    %1400 = vmatprep.subr.mxu0 %v118
    %1401 = vmatpush1.msra.mxu0 %v117
    %1402 = vmatprep.subr.mxu0 %v122
    %1403 = vmatpush1.msra.mxu0 %v121
    %1404 = vmatprep.subr.mxu0 %v126
    %1405 = vmatpush1.msra.mxu0 %v125
    %1406 = vmatprep.subr.mxu0 %v130
    %1407 = vmatpush1.msra.mxu0 %v129
    %1408 = vmatprep.subr.mxu0 %v134
    %1409 = vmatpush1.msra.mxu0 %v133
    %1410 = vmatprep.subr.mxu0 %v138
    %1411 = vmatpush1.msra.mxu0 %v137
    %1412 = vmatprep.subr.mxu0 %v142
    %1413 = vmatpush1.msra.mxu0 %v141
    %1414 = vmatprep.subr.mxu0 %v146
    %1415 = vmatpush1.msra.mxu0 %v145
    %1416 = vmatprep.subr.mxu0 %v150
    %1417 = vmatpush1.msra.mxu0 %v149
    %1418 = vmatprep.subr.mxu0 0.0
    %1419 = vmatpush1.msra.mxu0 0.0
    %1420 = vmatprep.subr.mxu0 0.0
    %1421 = vmatpush1.msra.mxu0 0.0
    %1422 = vmatprep.subr.mxu0 0.0
    %1423 = vmatpush1.msra.mxu0 0.0
    %1424 = vmatprep.subr.mxu0 0.0
    %1425 = vmatpush1.msra.mxu0 0.0
    %1426 = vmatprep.subr.mxu0 0.0
    %1427 = vmatpush1.msra.mxu0 0.0
    %1428 = vmatprep.subr.mxu0 0.0
    %1429 = vmatpush1.msra.mxu0 0.0
    %1430 = vmatprep.subr.mxu0 0.0
    %1431 = vmatpush1.msra.mxu0 0.0
    %1432 = vmatprep.subr.mxu0 0.0
    %1433 = vmatpush1.msra.mxu0 0.0
    %1434 = vmatprep.subr.mxu0 0.0
    %1435 = vmatpush1.msra.mxu0 0.0
    %1436 = vmatprep.subr.mxu0 0.0
    %1437 = vmatpush1.msra.mxu0 0.0
    %1438 = vmatprep.subr.mxu0 0.0
    %1439 = vmatpush1.msra.mxu0 0.0
    %1440 = vmatprep.subr.mxu0 0.0
    %1441 = vmatpush1.msra.mxu0 0.0
    %1442 = vmatprep.subr.mxu0 0.0
    %1443 = vmatpush1.msra.mxu0 0.0
    %1444 = vmatprep.subr.mxu0 0.0
    %1445 = vmatpush1.msra.mxu0 0.0
    %1446 = vmatprep.subr.mxu0 0.0
    %1447 = vmatpush1.msra.mxu0 0.0
    %1448 = vmatprep.subr.mxu0 0.0
    %1449 = vmatpush1.msra.mxu0 0.0
    %1450 = vmatprep.mubr.f32.mxu0 0.0
    %1451 = vmatmul.mubr.f32.gmra.mrb[0].mxu0 %v1312
    %v1452 = vpop.f32.mrb[0].mxu0
    %v1453 = vadd.f32 0.0, %v1452
    %v1454 = vpop.f32.mrb[0].mxu0
    %v1455 = vadd.f32 0.0, %v1454
    %1456 = vdwg.mxu0
    %v1461 = vcombine.low %v1382, %v1384
    %v1462 = vcombine.low %v1453, %v1455
    %v1464 = vunpack.c.l.s4 1966171168
    %v1465 = vunpack.c.0.s8 %v1464
    %v1466 = vlaneseq
    %v1467 = vshrl.u32 %v1466, 7
    %v1468 = vsub.s32 %v1465, %v1467
    %v1469 = vrot.slane %v1461, %v1468
    %v1471 = vunpack.c.l.s4 1966171168
    %v1472 = vunpack.c.0.s8 %v1471
    %v1473 = vlaneseq
    %v1474 = vshrl.u32 %v1473, 7
    %v1475 = vsub.s32 %v1472, %v1474
    %v1476 = vrot.slane %v1462, %v1475
    %v1477 = vcombine.low %v1469, %v1476
    %v1479 = vunpack.c.l.s4 1966171168
    %v1480 = vunpack.c.0.s8 %v1479
    %v1481 = vlaneseq
    %v1482 = vshrl.u32 %v1481, 7
    %v1483 = vsub.s32 %v1480, %v1482
    %v1484 = vrot.slane %v1477, %v1483
    %v1486 = vadd.f32 %v1314, %v1484
    %v1487 = vxor.u32 %v1486, 2147483648
    %v1488 = vmul.f32 %v1487, 1.442695
    %v1489 = vpow.pop %v1488
    %v1490 = vadd.f32 %v1489, 1.0
    %v1491 = vrcp.pop %v1490
    %v1492 = vmul.f32 1.0, %v1491
    %v1493 = vtanh.pop %v1486
    %v1495 = vrot.slane %v1492, 1
    %v1497 = vmul.f32 %v1495, %v1308
    %v1499 = vrot.slane %v1493, 2
    %v1501 = vmul.f32 %v1492, %v1499
    %v1502 = vadd.f32 %v1497, %v1501
    %v1503 = vtanh.pop %v1502
    %v1504 = vrot.slane %v1492, 3
    %v1506 = vmul.f32 %v1504, %v1503
    %s1507 = scalar_lea.vmem [#allocation2], 7
    %v1508 = vld [vmem:[%s1507] ss:$8 sm:$0xf]
    %1509 = vmatprep.subr.mxu0 %v88
    %1510 = vmatpush1.msra.mxu0 %v87
    %1511 = vmatprep.subr.mxu0 %v92
    %1512 = vmatpush1.msra.mxu0 %v91
    %1513 = vmatprep.subr.mxu0 %v96
    %1514 = vmatpush1.msra.mxu0 %v95
    %1515 = vmatprep.subr.mxu0 %v100
    %1516 = vmatpush1.msra.mxu0 %v99
    %1517 = vmatprep.subr.mxu0 %v104
    %1518 = vmatpush1.msra.mxu0 %v103
    %1519 = vmatprep.subr.mxu0 %v108
    %1520 = vmatpush1.msra.mxu0 %v107
    %1521 = vmatprep.subr.mxu0 %v112
    %1522 = vmatpush1.msra.mxu0 %v111
    %1523 = vmatprep.subr.mxu0 %v116
    %1524 = vmatpush1.msra.mxu0 %v115
    %1525 = vmatprep.subr.mxu0 %v120
    %1526 = vmatpush1.msra.mxu0 %v119
    %1527 = vmatprep.subr.mxu0 %v124
    %1528 = vmatpush1.msra.mxu0 %v123
    %1529 = vmatprep.subr.mxu0 %v128
    %1530 = vmatpush1.msra.mxu0 %v127
    %1531 = vmatprep.subr.mxu0 %v132
    %1532 = vmatpush1.msra.mxu0 %v131
    %1533 = vmatprep.subr.mxu0 %v136
    %1534 = vmatpush1.msra.mxu0 %v135
    %1535 = vmatprep.subr.mxu0 %v140
    %1536 = vmatpush1.msra.mxu0 %v139
    %1537 = vmatprep.subr.mxu0 %v144
    %1538 = vmatpush1.msra.mxu0 %v143
    %1539 = vmatprep.subr.mxu0 %v148
    %1540 = vmatpush1.msra.mxu0 %v147
    %1541 = vmatprep.subr.mxu0 0.0
    %1542 = vmatpush1.msra.mxu0 0.0
    %1543 = vmatprep.subr.mxu0 0.0
    %1544 = vmatpush1.msra.mxu0 0.0
    %1545 = vmatprep.subr.mxu0 0.0
    %1546 = vmatpush1.msra.mxu0 0.0
    %1547 = vmatprep.subr.mxu0 0.0
    %1548 = vmatpush1.msra.mxu0 0.0
    %1549 = vmatprep.subr.mxu0 0.0
    %1550 = vmatpush1.msra.mxu0 0.0
    %1551 = vmatprep.subr.mxu0 0.0
    %1552 = vmatpush1.msra.mxu0 0.0
    %1553 = vmatprep.subr.mxu0 0.0
    %1554 = vmatpush1.msra.mxu0 0.0
    %1555 = vmatprep.subr.mxu0 0.0
    %1556 = vmatpush1.msra.mxu0 0.0
    %1557 = vmatprep.subr.mxu0 0.0
    %1558 = vmatpush1.msra.mxu0 0.0
    %1559 = vmatprep.subr.mxu0 0.0
    %1560 = vmatpush1.msra.mxu0 0.0
    %1561 = vmatprep.subr.mxu0 0.0
    %1562 = vmatpush1.msra.mxu0 0.0
    %1563 = vmatprep.subr.mxu0 0.0
    %1564 = vmatpush1.msra.mxu0 0.0
    %1565 = vmatprep.subr.mxu0 0.0
    %1566 = vmatpush1.msra.mxu0 0.0
    %1567 = vmatprep.subr.mxu0 0.0
    %1568 = vmatpush1.msra.mxu0 0.0
    %1569 = vmatprep.subr.mxu0 0.0
    %1570 = vmatpush1.msra.mxu0 0.0
    %1571 = vmatprep.subr.mxu0 0.0
    %1572 = vmatpush1.msra.mxu0 0.0
    %1573 = vmatprep.mubr.f32.mxu0 0.0
    %1574 = vmatmul.mubr.f32.gmra.mrb[0].mxu0 %v1506
    %v1575 = vpop.f32.mrb[0].mxu0
    %v1576 = vadd.f32 0.0, %v1575
    %v1577 = vpop.f32.mrb[0].mxu0
    %v1578 = vadd.f32 0.0, %v1577
    %1579 = vdwg.mxu0
    %1580 = vmatprep.subr.mxu0 %v90
    %1581 = vmatpush1.msra.mxu0 %v89
    %1582 = vmatprep.subr.mxu0 %v94
    %1583 = vmatpush1.msra.mxu0 %v93
    %1584 = vmatprep.subr.mxu0 %v98
    %1585 = vmatpush1.msra.mxu0 %v97
    %1586 = vmatprep.subr.mxu0 %v102
    %1587 = vmatpush1.msra.mxu0 %v101
    %1588 = vmatprep.subr.mxu0 %v106
    %1589 = vmatpush1.msra.mxu0 %v105
    %1590 = vmatprep.subr.mxu0 %v110
    %1591 = vmatpush1.msra.mxu0 %v109
    %1592 = vmatprep.subr.mxu0 %v114
    %1593 = vmatpush1.msra.mxu0 %v113
    %1594 = vmatprep.subr.mxu0 %v118
    %1595 = vmatpush1.msra.mxu0 %v117
    %1596 = vmatprep.subr.mxu0 %v122
    %1597 = vmatpush1.msra.mxu0 %v121
    %1598 = vmatprep.subr.mxu0 %v126
    %1599 = vmatpush1.msra.mxu0 %v125
    %1600 = vmatprep.subr.mxu0 %v130
    %1601 = vmatpush1.msra.mxu0 %v129
    %1602 = vmatprep.subr.mxu0 %v134
    %1603 = vmatpush1.msra.mxu0 %v133
    %1604 = vmatprep.subr.mxu0 %v138
    %1605 = vmatpush1.msra.mxu0 %v137
    %1606 = vmatprep.subr.mxu0 %v142
    %1607 = vmatpush1.msra.mxu0 %v141
    %1608 = vmatprep.subr.mxu0 %v146
    %1609 = vmatpush1.msra.mxu0 %v145
    %1610 = vmatprep.subr.mxu0 %v150
    %1611 = vmatpush1.msra.mxu0 %v149
    %1612 = vmatprep.subr.mxu0 0.0
    %1613 = vmatpush1.msra.mxu0 0.0
    %1614 = vmatprep.subr.mxu0 0.0
    %1615 = vmatpush1.msra.mxu0 0.0
    %1616 = vmatprep.subr.mxu0 0.0
    %1617 = vmatpush1.msra.mxu0 0.0
    %1618 = vmatprep.subr.mxu0 0.0
    %1619 = vmatpush1.msra.mxu0 0.0
    %1620 = vmatprep.subr.mxu0 0.0
    %1621 = vmatpush1.msra.mxu0 0.0
    %1622 = vmatprep.subr.mxu0 0.0
    %1623 = vmatpush1.msra.mxu0 0.0
    %1624 = vmatprep.subr.mxu0 0.0
    %1625 = vmatpush1.msra.mxu0 0.0
    %1626 = vmatprep.subr.mxu0 0.0
    %1627 = vmatpush1.msra.mxu0 0.0
    %1628 = vmatprep.subr.mxu0 0.0
    %1629 = vmatpush1.msra.mxu0 0.0
    %1630 = vmatprep.subr.mxu0 0.0
    %1631 = vmatpush1.msra.mxu0 0.0
    %1632 = vmatprep.subr.mxu0 0.0
    %1633 = vmatpush1.msra.mxu0 0.0
    %1634 = vmatprep.subr.mxu0 0.0
    %1635 = vmatpush1.msra.mxu0 0.0
    %1636 = vmatprep.subr.mxu0 0.0
    %1637 = vmatpush1.msra.mxu0 0.0
    %1638 = vmatprep.subr.mxu0 0.0
    %1639 = vmatpush1.msra.mxu0 0.0
    %1640 = vmatprep.subr.mxu0 0.0
    %1641 = vmatpush1.msra.mxu0 0.0
    %1642 = vmatprep.subr.mxu0 0.0
    %1643 = vmatpush1.msra.mxu0 0.0
    %1644 = vmatprep.mubr.f32.mxu0 0.0
    %1645 = vmatmul.mubr.f32.gmra.mrb[0].mxu0 %v1506
    %v1646 = vpop.f32.mrb[0].mxu0
    %v1647 = vadd.f32 0.0, %v1646
    %v1648 = vpop.f32.mrb[0].mxu0
    %v1649 = vadd.f32 0.0, %v1648
    %1650 = vdwg.mxu0
    %v1655 = vcombine.low %v1576, %v1578
    %v1656 = vcombine.low %v1647, %v1649
    %v1658 = vunpack.c.l.s4 1966171168
    %v1659 = vunpack.c.0.s8 %v1658
    %v1660 = vlaneseq
    %v1661 = vshrl.u32 %v1660, 7
    %v1662 = vsub.s32 %v1659, %v1661
    %v1663 = vrot.slane %v1655, %v1662
    %v1665 = vunpack.c.l.s4 1966171168
    %v1666 = vunpack.c.0.s8 %v1665
    %v1667 = vlaneseq
    %v1668 = vshrl.u32 %v1667, 7
    %v1669 = vsub.s32 %v1666, %v1668
    %v1670 = vrot.slane %v1656, %v1669
    %v1671 = vcombine.low %v1663, %v1670
    %v1673 = vunpack.c.l.s4 1966171168
    %v1674 = vunpack.c.0.s8 %v1673
    %v1675 = vlaneseq
    %v1676 = vshrl.u32 %v1675, 7
    %v1677 = vsub.s32 %v1674, %v1676
    %v1678 = vrot.slane %v1671, %v1677
    %v1680 = vadd.f32 %v1508, %v1678
    %v1681 = vxor.u32 %v1680, 2147483648
    %v1682 = vmul.f32 %v1681, 1.442695
    %v1683 = vpow.pop %v1682
    %v1684 = vadd.f32 %v1683, 1.0
    %v1685 = vrcp.pop %v1684
    %v1686 = vmul.f32 1.0, %v1685
    %v1687 = vtanh.pop %v1680
    %v1689 = vrot.slane %v1686, 1
    %v1691 = vmul.f32 %v1689, %v1502
    %v1693 = vrot.slane %v1687, 2
    %v1695 = vmul.f32 %v1686, %v1693
    %v1696 = vadd.f32 %v1691, %v1695
    %v1697 = vtanh.pop %v1696
    %v1698 = vrot.slane %v1686, 3
    %v1700 = vmul.f32 %v1698, %v1697
    %v1701 = vld [vmem:[%s4] sm:$0xff]
    %v1702 = vld [vmem:[%s4 + $0x8] sm:$0xff]
    %v1703 = vld [vmem:[%s4 + $0x10] sm:$0xff]
    %v1704 = vld [vmem:[%s4 + $0x18] sm:$0xff]
    %v1705 = vld [vmem:[%s4 + $0x20] sm:$0xff]
    %v1706 = vld [vmem:[%s4 + $0x28] sm:$0xff]
    %v1707 = vld [vmem:[%s4 + $0x30] sm:$0xff]
    %v1708 = vld [vmem:[%s4 + $0x38] sm:$0xff]
    %v1709 = vld [vmem:[%s4 + $0x40] sm:$0xff]
    %v1710 = vld [vmem:[%s4 + $0x48] sm:$0xff]
    %v1711 = vld [vmem:[%s4 + $0x50] sm:$0xff]
    %v1712 = vld [vmem:[%s4 + $0x58] sm:$0xff]
    %v1713 = vld [vmem:[%s4 + $0x60] sm:$0xff]
    %v1714 = vld [vmem:[%s4 + $0x68] sm:$0xff]
    %v1715 = vld [vmem:[%s4 + $0x70] sm:$0xff]
    %v1716 = vld [vmem:[%s4 + $0x78] sm:$0xff]
    %v1717 = vld [vmem:[%s5] sm:$0x1]
    %1718 = vmatprep.subr.mxu0 0.0
    %1719 = vmatpush1.msra.mxu0 %v1701
    %1720 = vmatprep.subr.mxu0 0.0
    %1721 = vmatpush1.msra.mxu0 %v1702
    %1722 = vmatprep.subr.mxu0 0.0
    %1723 = vmatpush1.msra.mxu0 %v1703
    %1724 = vmatprep.subr.mxu0 0.0
    %1725 = vmatpush1.msra.mxu0 %v1704
    %1726 = vmatprep.subr.mxu0 0.0
    %1727 = vmatpush1.msra.mxu0 %v1705
    %1728 = vmatprep.subr.mxu0 0.0
    %1729 = vmatpush1.msra.mxu0 %v1706
    %1730 = vmatprep.subr.mxu0 0.0
    %1731 = vmatpush1.msra.mxu0 %v1707
    %1732 = vmatprep.subr.mxu0 0.0
    %1733 = vmatpush1.msra.mxu0 %v1708
    %1734 = vmatprep.subr.mxu0 0.0
    %1735 = vmatpush1.msra.mxu0 %v1709
    %1736 = vmatprep.subr.mxu0 0.0
    %1737 = vmatpush1.msra.mxu0 %v1710
    %1738 = vmatprep.subr.mxu0 0.0
    %1739 = vmatpush1.msra.mxu0 %v1711
    %1740 = vmatprep.subr.mxu0 0.0
    %1741 = vmatpush1.msra.mxu0 %v1712
    %1742 = vmatprep.subr.mxu0 0.0
    %1743 = vmatpush1.msra.mxu0 %v1713
    %1744 = vmatprep.subr.mxu0 0.0
    %1745 = vmatpush1.msra.mxu0 %v1714
    %1746 = vmatprep.subr.mxu0 0.0
    %1747 = vmatpush1.msra.mxu0 %v1715
    %1748 = vmatprep.subr.mxu0 0.0
    %1749 = vmatpush1.msra.mxu0 %v1716
    %1750 = vmatprep.subr.mxu0 0.0
    %1751 = vmatpush1.msra.mxu0 0.0
    %1752 = vmatprep.subr.mxu0 0.0
    %1753 = vmatpush1.msra.mxu0 0.0
    %1754 = vmatprep.subr.mxu0 0.0
    %1755 = vmatpush1.msra.mxu0 0.0
    %1756 = vmatprep.subr.mxu0 0.0
    %1757 = vmatpush1.msra.mxu0 0.0
    %1758 = vmatprep.subr.mxu0 0.0
    %1759 = vmatpush1.msra.mxu0 0.0
    %1760 = vmatprep.subr.mxu0 0.0
    %1761 = vmatpush1.msra.mxu0 0.0
    %1762 = vmatprep.subr.mxu0 0.0
    %1763 = vmatpush1.msra.mxu0 0.0
    %1764 = vmatprep.subr.mxu0 0.0
    %1765 = vmatpush1.msra.mxu0 0.0
    %1766 = vmatprep.subr.mxu0 0.0
    %1767 = vmatpush1.msra.mxu0 0.0
    %1768 = vmatprep.subr.mxu0 0.0
    %1769 = vmatpush1.msra.mxu0 0.0
    %1770 = vmatprep.subr.mxu0 0.0
    %1771 = vmatpush1.msra.mxu0 0.0
    %1772 = vmatprep.subr.mxu0 0.0
    %1773 = vmatpush1.msra.mxu0 0.0
    %1774 = vmatprep.subr.mxu0 0.0
    %1775 = vmatpush1.msra.mxu0 0.0
    %1776 = vmatprep.subr.mxu0 0.0
    %1777 = vmatpush1.msra.mxu0 0.0
    %1778 = vmatprep.subr.mxu0 0.0
    %1779 = vmatpush1.msra.mxu0 0.0
    %1780 = vmatprep.subr.mxu0 0.0
    %1781 = vmatpush1.msra.mxu0 0.0
    %1782 = vmatprep.mubr.f32.mxu0 0.0
    %1783 = vmatmul.mubr.f32.gmra.mrb[0].mxu0 %v1700
    %v1784 = vpop.f32.mrb[0].mxu0
    %v1785 = vadd.f32 %v1717, %v1784
    %v1786 = vpop.f32.mrb[0].mxu0
    %1787 = vdwg.mxu0
    %1788 = vst [vmem:[#allocation3] sm:$0x1] %v1785
    // Predicated region
    $region26: #{lstm_forward.1} parent=1 // pred_check
      _
    $region27: #{lstm_forward.1} parent=1 // pred_check_branch
      %1790 = sbr.rel (0) target = $region29
    $region28: #{lstm_forward.1} parent=1 // pred_region
      %s1792 = ssub.s32 16, 16
      %1793 = vsyncadd [#allocation4], %s1792
      %s1795 = sshll.u32 [#allocation3], 4
      %s1796 = int_to_ptr.vmem [resolvable:$true] %s1795
      %1798 = dma.vmem_to_hbm [thread:$0]  %s1796, 16, %s6, [#allocation4]
    $region29: #{lstm_forward.1} parent=1 // pred_fallthru
      _
    // Predicated region
    $region30: #{lstm_forward.1} parent=1 // pred_check
      _
    $region31: #{lstm_forward.1} parent=1 // pred_check_branch
      %1800 = sbr.rel (0) target = $region33
    $region32: #{lstm_forward.1} parent=1 // pred_region
      %1801 = dma.done [#allocation4], 16
    $region33: #{lstm_forward.1} parent=1 // pred_fallthru
      _
    %1802 = vsyncpa [#allocation4], 1

</llo_original>
